<compile_context>
chip_gen: v7x
topology: tpu7x:2x2x1
jax: 0.10.0
libtpu: 0.0.40
codegen_flags: <defaults>
</compile_context>

<pallas_src>
import math
import numpy as np
import jax
import jax.numpy as jnp
from jax.experimental import pallas as pl
from jax.experimental.pallas import tpu as pltpu

jax.config.update("jax_default_matmul_precision", "highest")

# Hyperparameters consistent with the module's example tensors:
#   q: [B, query_size, S], c_t: [B, T, context_size]
B = 2          # batch
Q_SIZE = 9     # query_size
S = 5          # sequence length (q.size(2))
T = 3          # context steps
C_SIZE = 4     # context_size
P_SIZE = 3     # alignment_size
D = 3          # local window half-width

_HIGH = jax.lax.Precision.HIGHEST


def local_attention_pallas(q, c_t, wa, wp, vp, d=D):
    """q: [B, Q, S], c_t: [B, T, C]; wa: [C, Q], wp: [P, C], vp: [1, P] (torch Linear weights)."""
    # TODO(synk): the PyTorch `c_t is None` zero-context branch is left to callers
    # (pass jnp.zeros((B, 1, C))); training-only attrs (MSELoss/Adam) are out of scope.
    b, qd, s = q.shape
    t, cd = c_t.shape[1], c_t.shape[2]
    p = wp.shape[0]
    bt, bs = b * t, b * s

    # ---- wrapper-side layout plumbing (free HBM views / tiny copies) ----
    c2 = c_t.reshape(bt, cd)                                  # [B*T, C]
    q_flat = jnp.transpose(q, (1, 0, 2)).reshape(qd, bs)      # [Q, B*S]: q_flat[f, b*S+j] = q[b,f,j]
    qt_flat = jnp.transpose(q, (0, 2, 1)).reshape(bs, qd)     # [B*S, Q]: qt_flat[b*S+j, f] = q[b,f,j]
    # Single fused weight operand: rows 0..C-1 = [W_a | W_p^T], row C = [0 | V_p].
    w_all = jnp.zeros((cd + 1, qd + p), jnp.float32)
    w_all = w_all.at[:cd, :qd].set(wa)
    w_all = w_all.at[:cd, qd:].set(wp.T)
    w_all = w_all.at[cd, qd:].set(vp[0])

    def kernel(c2_ref, qf_ref, qt_ref, w_ref, out_ref):
        c2v = c2_ref[...]                                     # [BT, C]
        w_allv = w_ref[...]                                   # [C+1, Q+P]
        w = w_allv[:cd, :]                                    # [C, Q+P]
        vp_row = w_allv[cd:cd + 1, qd:]                       # [1, P]

        # One MXU matmul for both projections: [c_t @ W_a^T-equiv | c_t @ W_p^T].
        z = jnp.dot(c2v, w, preferred_element_type=jnp.float32, precision=_HIGH)
        c_wa = z[:, :qd]                                      # [BT, Q]
        h = jnp.tanh(z[:, qd:])                               # [BT, P]

        # V_p: VPU broadcast-multiply + tiny lane reduce (no degenerate N=1 matmul).
        logit = jnp.sum(h * vp_row, axis=-1, keepdims=True)   # [BT, 1]
        p_t = float(s) * (1.0 / (1.0 + jnp.exp(-logit)))      # exact sigmoid
        p_int = p_t.astype(jnp.int32)                         # trunc == floor (p_t >= 0)

        # Scores against every (batch, position) column at once; wrong-batch and
        # out-of-window columns are masked away before the softmax.
        scores = jnp.dot(c_wa, qf_ref[...],
                         preferred_element_type=jnp.float32, precision=_HIGH)  # [BT, B*S]

        col = jax.lax.broadcasted_iota(jnp.int32, (bt, bs), 1)
        row = jax.lax.broadcasted_iota(jnp.int32, (bt, bs), 0)
        batch_idx = jnp.zeros((bt, bs), jnp.int32)
        for k in range(1, b):                                 # b static & tiny: no int division
            batch_idx = batch_idx + (row >= k * t).astype(jnp.int32)
        j = col - batch_idx * s                               # local position within own batch
        own = (j >= 0) & (j < s)
        win = (j >= p_int - d) & (j <= p_int + d)
        mask = own & win

        # Masked softmax over the window (exact normalization — fixes the rtol fail).
        neg = jnp.float32(-1e30)
        a = jnp.where(mask, scores, neg)
        m = jnp.max(a, axis=-1, keepdims=True)
        e = jnp.where(mask, jnp.exp(a - m), 0.0)
        attn = e / jnp.sum(e, axis=-1, keepdims=True)

        # Gaussian positional weighting exp(-2*((j - p_t)/D)^2); attn is already 0
        # outside the window so masked columns contribute nothing.
        pos = j.astype(jnp.float32)
        gauss = jnp.exp(-2.0 * jnp.square((pos - p_t) / float(d)))
        mix = attn * gauss                                    # [BT, B*S]

        out = jnp.dot(mix, qt_ref[...],
                      preferred_element_type=jnp.float32, precision=_HIGH)     # [BT, Q]
        out_ref[...] = out.astype(out_ref.dtype)

    out_flat = pl.pallas_call(
        kernel,
        out_shape=jax.ShapeDtypeStruct((bt, qd), jnp.float32),
        in_specs=[
            pl.BlockSpec(memory_space=pltpu.MemorySpace.VMEM),   # c2       [BT, C]
            pl.BlockSpec(memory_space=pltpu.MemorySpace.VMEM),   # q_flat   [Q, B*S]
            pl.BlockSpec(memory_space=pltpu.MemorySpace.VMEM),   # qt_flat  [B*S, Q]
            pl.BlockSpec(memory_space=pltpu.MemorySpace.VMEM),   # w_all    [C+1, Q+P]
        ],
        out_specs=pl.BlockSpec(memory_space=pltpu.MemorySpace.VMEM),
    )(c2, q_flat, qt_flat, w_all)
    return out_flat.reshape(b, t, qd)


def local_attention_ref(q, c_t, wa, wp, vp, d=D):
    """Pure-JAX reference mirroring the PyTorch forward (incl. NaN-pad trick)."""
    b, qd, s = q.shape
    t = c_t.shape[1]
    w = 2 * d + 1
    logit = jnp.tanh(c_t @ wp.T) @ vp.T                                        # [B, T, 1]
    p_t = s * (1.0 / (1.0 + jnp.exp(-logit)))                                  # [B, T, 1]
    q_pad = jnp.concatenate([jnp.full((b, qd, 1), jnp.nan, q.dtype), q], axis=2)
    qT = jnp.transpose(q_pad, (0, 2, 1))                                       # [B, S+1, Q]
    p_int = p_t[..., 0].astype(jnp.int32)                                      # [B, T]
    offs = jnp.arange(-d, d + 1) + 1
    sidx = jnp.clip(p_int[..., None] + offs[None, None, :], 0, s + 1) % (s + 1)  # [B, T, W]
    qg = jax.vmap(lambda a, i: a[i])(qT, sidx.reshape(b, -1)).reshape(b, t, w, qd)
    nan_loc = jnp.isnan(qg[..., 0])
    qg = jnp.where(nan_loc[..., None], 0.0, qg)
    wa_q = qg @ wa.T                                                           # [B, T, W, C]
    a_t = jnp.sum(wa_q * c_t[:, :, None, :], axis=-1)                          # [B, T, W]
    a_t = jnp.where(nan_loc, -jnp.inf, a_t)
    attn = jax.nn.softmax(a_t, axis=2)
    pos = jnp.maximum(sidx.astype(jnp.float32) - 1.0, 0.0)
    gauss = jnp.exp(-2.0 * jnp.square((pos - p_t) / d))
    w_attn = attn * gauss
    return jnp.sum(w_attn[..., None] * qg, axis=2)                             # [B, T, Q]


if __name__ == "__main__":
    key = jax.random.PRNGKey(0)
    k1, k2, k3, k4, k5 = jax.random.split(key, 5)
    # Deterministic parameter init (PyTorch Linear default: U(-1/sqrt(fan_in), 1/sqrt(fan_in)))
    wa = jax.random.uniform(k1, (C_SIZE, Q_SIZE), jnp.float32,
                            minval=-1 / math.sqrt(Q_SIZE), maxval=1 / math.sqrt(Q_SIZE))
    wp = jax.random.uniform(k2, (P_SIZE, C_SIZE), jnp.float32,
                            minval=-1 / math.sqrt(C_SIZE), maxval=1 / math.sqrt(C_SIZE))
    vp = jax.random.uniform(k3, (1, P_SIZE), jnp.float32,
                            minval=-1 / math.sqrt(P_SIZE), maxval=1 / math.sqrt(P_SIZE))
    q = jax.random.uniform(k4, (B, Q_SIZE, S), jnp.float32)
    c_t = jax.random.uniform(k5, (B, T, C_SIZE), jnp.float32)

    out = local_attention_pallas(q, c_t, wa, wp, vp)
    jax.block_until_ready(out)

    ref = local_attention_ref(q, c_t, wa, wp, vp)
    np.testing.assert_allclose(np.asarray(out), np.asarray(ref), rtol=1e-3, atol=1e-3)
    print("KERNEL_OK")
</pallas_src>

<mosaic_0001>
module attributes {stable_mosaic.version = 11 : i64} {
  func.func @kernel(%arg0: memref<6x4xf32, #tpu.memory_space<vmem>>, %arg1: memref<9x10xf32, #tpu.memory_space<vmem>>, %arg2: memref<10x9xf32, #tpu.memory_space<vmem>>, %arg3: memref<5x12xf32, #tpu.memory_space<vmem>>, %arg4: memref<6x9xf32, #tpu.memory_space<vmem>>) attributes {dimension_semantics = [], scalar_prefetch = 0 : i64, scratch_operands = 0 : i64, tpu.core_type = #tpu.core_type<tc>} {
    %c0 = arith.constant 0 : index
    %c0_0 = arith.constant 0 : index
    %0 = vector.load %arg0[%c0, %c0_0] : memref<6x4xf32, #tpu.memory_space<vmem>>, vector<6x4xf32>
    %c0_1 = arith.constant 0 : index
    %c0_2 = arith.constant 0 : index
    %1 = vector.load %arg3[%c0_1, %c0_2] : memref<5x12xf32, #tpu.memory_space<vmem>>, vector<5x12xf32>
    %2 = vector.extract_strided_slice %1 {offsets = [0, 0], sizes = [4, 12], strides = [1, 1]} : vector<5x12xf32> to vector<4x12xf32>
    %3 = vector.extract_strided_slice %1 {offsets = [4, 9], sizes = [1, 3], strides = [1, 1]} : vector<5x12xf32> to vector<1x3xf32>
    %cst = arith.constant dense<0.000000e+00> : vector<6x12xf32>
    %4 = tpu.matmul %0, %2, %cst {dimension_numbers = #tpu.dot_dimension_numbers<[1], [0], [0], [1], [0, 0, 1, 1], [], []>, precision = #tpu.contract_precision<fp32>} : vector<6x4xf32>, vector<4x12xf32>, vector<6x12xf32> -> vector<6x12xf32>
    %5 = vector.extract_strided_slice %4 {offsets = [0, 0], sizes = [6, 9], strides = [1, 1]} : vector<6x12xf32> to vector<6x9xf32>
    %6 = vector.extract_strided_slice %4 {offsets = [0, 9], sizes = [6, 3], strides = [1, 1]} : vector<6x12xf32> to vector<6x3xf32>
    %7 = math.tanh %6 : vector<6x3xf32>
    %8 = vector.broadcast %3 : vector<1x3xf32> to vector<6x3xf32>
    %9 = arith.mulf %7, %8 : vector<6x3xf32>
    %cst_3 = arith.constant dense<0.000000e+00> : vector<6xf32>
    %10 = vector.multi_reduction <add>, %9, %cst_3 [1] : vector<6x3xf32> to vector<6xf32>
    %11 = vector.shape_cast %10 : vector<6xf32> to vector<6x1xf32>
    %cst_4 = arith.constant 0.000000e+00 : f32
    %12 = vector.broadcast %cst_4 : f32 to vector<6x1xf32>
    %13 = arith.subf %12, %11 : vector<6x1xf32>
    %14 = math.exp %13 : vector<6x1xf32>
    %cst_5 = arith.constant 1.000000e+00 : f32
    %15 = vector.broadcast %cst_5 : f32 to vector<6x1xf32>
    %16 = arith.addf %15, %14 : vector<6x1xf32>
    %cst_6 = arith.constant 1.000000e+00 : f32
    %17 = vector.broadcast %cst_6 : f32 to vector<6x1xf32>
    %18 = arith.divf %17, %16 : vector<6x1xf32>
    %cst_7 = arith.constant 5.000000e+00 : f32
    %19 = vector.broadcast %cst_7 : f32 to vector<6x1xf32>
    %20 = arith.mulf %19, %18 : vector<6x1xf32>
    %21 = arith.fptosi %20 : vector<6x1xf32> to vector<6x1xi32>
    %c0_8 = arith.constant 0 : index
    %c0_9 = arith.constant 0 : index
    %22 = vector.load %arg1[%c0_8, %c0_9] : memref<9x10xf32, #tpu.memory_space<vmem>>, vector<9x10xf32>
    %cst_10 = arith.constant dense<0.000000e+00> : vector<6x10xf32>
    %23 = tpu.matmul %5, %22, %cst_10 {dimension_numbers = #tpu.dot_dimension_numbers<[1], [0], [0], [1], [0, 0, 1, 1], [], []>, precision = #tpu.contract_precision<fp32>} : vector<6x9xf32>, vector<9x10xf32>, vector<6x10xf32> -> vector<6x10xf32>
    %24 = tpu.iota {dimensions = array<i32: 1>} : vector<6x10xi32>
    %25 = tpu.iota {dimensions = array<i32: 0>} : vector<6x10xi32>
    %c0_i32 = arith.constant 0 : i32
    %26 = vector.broadcast %c0_i32 : i32 to vector<6x10xi32>
    %c3_i32 = arith.constant 3 : i32
    %27 = vector.broadcast %c3_i32 : i32 to vector<6x10xi32>
    %28 = arith.cmpi sge, %25, %27 : vector<6x10xi32>
    %29 = arith.extui %28 : vector<6x10xi1> to vector<6x10xi32>
    %30 = arith.addi %26, %29 : vector<6x10xi32>
    %c5_i32 = arith.constant 5 : i32
    %31 = vector.broadcast %c5_i32 : i32 to vector<6x10xi32>
    %32 = arith.muli %30, %31 : vector<6x10xi32>
    %33 = arith.subi %24, %32 : vector<6x10xi32>
    %c0_i32_11 = arith.constant 0 : i32
    %34 = vector.broadcast %c0_i32_11 : i32 to vector<6x10xi32>
    %35 = arith.cmpi sge, %33, %34 : vector<6x10xi32>
    %c5_i32_12 = arith.constant 5 : i32
    %36 = vector.broadcast %c5_i32_12 : i32 to vector<6x10xi32>
    %37 = arith.cmpi slt, %33, %36 : vector<6x10xi32>
    %38 = arith.andi %35, %37 : vector<6x10xi1>
    %c3_i32_13 = arith.constant 3 : i32
    %39 = vector.broadcast %c3_i32_13 : i32 to vector<6x1xi32>
    %40 = arith.subi %21, %39 : vector<6x1xi32>
    %41 = vector.broadcast %40 : vector<6x1xi32> to vector<6x10xi32>
    %42 = arith.cmpi sge, %33, %41 : vector<6x10xi32>
    %c3_i32_14 = arith.constant 3 : i32
    %43 = vector.broadcast %c3_i32_14 : i32 to vector<6x1xi32>
    %44 = arith.addi %21, %43 : vector<6x1xi32>
    %45 = vector.broadcast %44 : vector<6x1xi32> to vector<6x10xi32>
    %46 = arith.cmpi sle, %33, %45 : vector<6x10xi32>
    %47 = arith.andi %42, %46 : vector<6x10xi1>
    %48 = arith.andi %38, %47 : vector<6x10xi1>
    %cst_15 = arith.constant -1.000000e+30 : f32
    %49 = vector.broadcast %cst_15 : f32 to vector<6x10xf32>
    %50 = arith.select %48, %23, %49 : vector<6x10xi1>, vector<6x10xf32>
    %cst_16 = arith.constant dense<0xFF800000> : vector<6xf32>
    %51 = vector.multi_reduction <maximumf>, %50, %cst_16 [1] : vector<6x10xf32> to vector<6xf32>
    %52 = vector.shape_cast %51 : vector<6xf32> to vector<6x1xf32>
    %53 = vector.broadcast %52 : vector<6x1xf32> to vector<6x10xf32>
    %54 = arith.subf %50, %53 : vector<6x10xf32>
    %55 = math.exp %54 : vector<6x10xf32>
    %cst_17 = arith.constant 0.000000e+00 : f32
    %56 = vector.broadcast %cst_17 : f32 to vector<6x10xf32>
    %57 = arith.select %48, %55, %56 : vector<6x10xi1>, vector<6x10xf32>
    %cst_18 = arith.constant dense<0.000000e+00> : vector<6xf32>
    %58 = vector.multi_reduction <add>, %57, %cst_18 [1] : vector<6x10xf32> to vector<6xf32>
    %59 = vector.shape_cast %58 : vector<6xf32> to vector<6x1xf32>
    %60 = vector.broadcast %59 : vector<6x1xf32> to vector<6x10xf32>
    %61 = arith.divf %57, %60 : vector<6x10xf32>
    %62 = arith.sitofp %33 : vector<6x10xi32> to vector<6x10xf32>
    %63 = vector.broadcast %20 : vector<6x1xf32> to vector<6x10xf32>
    %64 = arith.subf %62, %63 : vector<6x10xf32>
    %cst_19 = arith.constant 3.000000e+00 : f32
    %65 = vector.broadcast %cst_19 : f32 to vector<6x10xf32>
    %66 = arith.divf %64, %65 : vector<6x10xf32>
    %67 = arith.mulf %66, %66 : vector<6x10xf32>
    %cst_20 = arith.constant -2.000000e+00 : f32
    %68 = vector.broadcast %cst_20 : f32 to vector<6x10xf32>
    %69 = arith.mulf %68, %67 : vector<6x10xf32>
    %70 = math.exp %69 : vector<6x10xf32>
    %71 = arith.mulf %61, %70 : vector<6x10xf32>
    %c0_21 = arith.constant 0 : index
    %c0_22 = arith.constant 0 : index
    %72 = vector.load %arg2[%c0_21, %c0_22] : memref<10x9xf32, #tpu.memory_space<vmem>>, vector<10x9xf32>
    %cst_23 = arith.constant dense<0.000000e+00> : vector<6x9xf32>
    %73 = tpu.matmul %71, %72, %cst_23 {dimension_numbers = #tpu.dot_dimension_numbers<[1], [0], [0], [1], [0, 0, 1, 1], [], []>, precision = #tpu.contract_precision<fp32>} : vector<6x10xf32>, vector<10x9xf32>, vector<6x9xf32> -> vector<6x9xf32>
    %c0_24 = arith.constant 0 : index
    %c0_25 = arith.constant 0 : index
    %74 = vector.load %arg4[%c0_24, %c0_25] : memref<6x9xf32, #tpu.memory_space<vmem>>, vector<6x9xf32>
    tpu.vector_store %arg4[%c0_24, %c0_25], %73 {strides = array<i32>} : memref<6x9xf32, #tpu.memory_space<vmem>>, vector<6x9xf32>,
    return
  }
}

</mosaic_0001>

<llo_original>
// kernel: tpu_custom_call.1
$region0: #{tpu_custom_call.1}
  #allocation0 [shape = 'u32[]', space=smem, size = 0x4, offset = 0x4, fixed_abs, tag = 'smem constant byte address 0x4 - core index']
  #allocation1 [shape = 'u32[144,128]{1,0:T(1,128)}', space=vmem, size = 0x12000, scoped, tag = 'internal scratch']
  %s0 = inlined_call_operand.vmem [shape: f32[6,4], index: 0, kind: input, shape index: {}]
  %s1 = inlined_call_operand.hbm [shape: f32[9,10], index: 1, kind: input, shape index: {}]
  %s2 = inlined_call_operand.vmem [shape: f32[10,9], index: 2, kind: input, shape index: {}]
  %s3 = inlined_call_operand.hbm [shape: f32[5,12], index: 3, kind: input, shape index: {}]
  %s4 = inlined_call_operand.hbm [shape: f32[6,9], index: 4, kind: output, shape index: {}]
  %s5 = sld [smem:[#allocation0]]
  $region34: #{tpu_custom_call.1} parent=0
    _
  %s7 = ssub.s32 1, %s5
  %s8 = scalar_select 0, %s7, %s5
  $region1: #{tpu_custom_call.1} parent=0
    #allocation2 [shape = 'u8[8192]{0}', space=vmem, size = 0x2000, scoped, tag = 'input window, operand 1, single buffered']
    #allocation3 [shape = 's32[1]{0}', space=sflag, size = 0x4, scoped, tag = 'scoped memory for tpu_custom_call.1']
    #allocation4 [shape = 's32[1]{0}', space=sflag, size = 0x4, scoped, tag = 'scoped memory for tpu_custom_call.1']
    #allocation5 [shape = 'u8[4096]{0}', space=vmem, size = 0x1000, scoped, tag = 'input window, operand 3, single buffered']
    #allocation6 [shape = 's32[1]{0}', space=sflag, size = 0x4, scoped, tag = 'scoped memory for tpu_custom_call.1']
    #allocation7 [shape = 'u8[4096]{0}', space=vmem, size = 0x1000, scoped, tag = 'output window, operand 0, single buffered']
    %9 = vsyncpa [#allocation3], 0
    %10 = vsyncpa [#allocation6], 0
    %11 = vsyncpa [#allocation4], 0
    // Predicated region
    $region2: #{tpu_custom_call.1} parent=1 // pred_check
      _
    $region3: #{tpu_custom_call.1} parent=1 // pred_check_branch
      %13 = sbr.rel (0) target = $region5
    $region4: #{tpu_custom_call.1} parent=1 // pred_region
      _
    $region5: #{tpu_custom_call.1} parent=1 // pred_fallthru
      _
    // Predicated region
    $region6: #{tpu_custom_call.1} parent=1 // pred_check
      _
    $region7: #{tpu_custom_call.1} parent=1 // pred_check_branch
      %15 = sbr.rel (0) target = $region9
    $region8: #{tpu_custom_call.1} parent=1 // pred_region
      %s17 = ssub.s32 256, 256
      %18 = vsyncadd [#allocation3], %s17
      %s19 = sshll.u32 [#allocation2], 4
      %s20 = int_to_ptr.vmem [resolvable:$true] %s19
      %25 = dma.hbm_to_vmem [thread:$0]  %s1, 256, %s20, [#allocation3], 128, 128, 8
    $region9: #{tpu_custom_call.1} parent=1 // pred_fallthru
      _
    // Predicated region
    $region10: #{tpu_custom_call.1} parent=1 // pred_check
      _
    $region11: #{tpu_custom_call.1} parent=1 // pred_check_branch
      %27 = sbr.rel (0) target = $region13
    $region12: #{tpu_custom_call.1} parent=1 // pred_region
      _
    $region13: #{tpu_custom_call.1} parent=1 // pred_fallthru
      _
    // Predicated region
    $region14: #{tpu_custom_call.1} parent=1 // pred_check
      _
    $region15: #{tpu_custom_call.1} parent=1 // pred_check_branch
      %29 = sbr.rel (0) target = $region17
    $region16: #{tpu_custom_call.1} parent=1 // pred_region
      %s31 = ssub.s32 128, 128
      %32 = vsyncadd [#allocation6], %s31
      %s34 = sshll.u32 [#allocation5], 4
      %s35 = int_to_ptr.vmem [resolvable:$true] %s34
      %37 = dma.hbm_to_vmem [thread:$0]  %s3, 128, %s35, [#allocation6]
    $region17: #{tpu_custom_call.1} parent=1 // pred_fallthru
      _
    // Predicated region
    $region18: #{tpu_custom_call.1} parent=1 // pred_check
      _
    $region19: #{tpu_custom_call.1} parent=1 // pred_check_branch
      %39 = sbr.rel (0) target = $region21
    $region20: #{tpu_custom_call.1} parent=1 // pred_region
      %40 = dma.done [#allocation3], 256
    $region21: #{tpu_custom_call.1} parent=1 // pred_fallthru
      _
    // Predicated region
    $region22: #{tpu_custom_call.1} parent=1 // pred_check
      _
    $region23: #{tpu_custom_call.1} parent=1 // pred_check_branch
      %42 = sbr.rel (0) target = $region25
    $region24: #{tpu_custom_call.1} parent=1 // pred_region
      %43 = dma.done [#allocation6], 128
    $region25: #{tpu_custom_call.1} parent=1 // pred_fallthru
      _
    %v44 = vld [vmem:[%s0] sm:$0x3f]
    %v45 = vld [vmem:[#allocation5] sm:$0x1f]
    %vm46 = vcmask 31744
    %v48 = vsel %vm46, %v44, 0
    %vm50 = vcmask 1043456
    %v52 = vsel %vm50, %v45, 0
    %54 = vmatprep.subr.mxu0 0.0
    %v55 = vand.u32 %v52, 4294901760
    %56 = vmatpush1.msra.mxu0 %v55
    %57 = vmatprep.subr.mxu0 0.0
    %58 = vmatpush1.msra.mxu0 0.0
    %59 = vmatprep.subr.mxu0 0.0
    %60 = vmatpush1.msra.mxu0 0.0
    %61 = vmatprep.subr.mxu0 0.0
    %62 = vmatpush1.msra.mxu0 0.0
    %63 = vmatprep.subr.mxu0 0.0
    %64 = vmatpush1.msra.mxu0 0.0
    %65 = vmatprep.subr.mxu0 0.0
    %66 = vmatpush1.msra.mxu0 0.0
    %67 = vmatprep.subr.mxu0 0.0
    %68 = vmatpush1.msra.mxu0 0.0
    %69 = vmatprep.subr.mxu0 0.0
    %70 = vmatpush1.msra.mxu0 0.0
    %71 = vmatprep.subr.mxu0 0.0
    %72 = vmatpush1.msra.mxu0 0.0
    %73 = vmatprep.subr.mxu0 0.0
    %74 = vmatpush1.msra.mxu0 0.0
    %75 = vmatprep.subr.mxu0 0.0
    %76 = vmatpush1.msra.mxu0 0.0
    %77 = vmatprep.subr.mxu0 0.0
    %78 = vmatpush1.msra.mxu0 0.0
    %79 = vmatprep.subr.mxu0 0.0
    %80 = vmatpush1.msra.mxu0 0.0
    %81 = vmatprep.subr.mxu0 0.0
    %82 = vmatpush1.msra.mxu0 0.0
    %83 = vmatprep.subr.mxu0 0.0
    %84 = vmatpush1.msra.mxu0 0.0
    %85 = vmatprep.subr.mxu0 0.0
    %86 = vmatpush1.msra.mxu0 0.0
    %87 = vmatprep.subr.mxu0 0.0
    %88 = vmatpush1.msra.mxu0 0.0
    %89 = vmatprep.subr.mxu0 0.0
    %90 = vmatpush1.msra.mxu0 0.0
    %91 = vmatprep.subr.mxu0 0.0
    %92 = vmatpush1.msra.mxu0 0.0
    %93 = vmatprep.subr.mxu0 0.0
    %94 = vmatpush1.msra.mxu0 0.0
    %95 = vmatprep.subr.mxu0 0.0
    %96 = vmatpush1.msra.mxu0 0.0
    %97 = vmatprep.subr.mxu0 0.0
    %98 = vmatpush1.msra.mxu0 0.0
    %99 = vmatprep.subr.mxu0 0.0
    %100 = vmatpush1.msra.mxu0 0.0
    %101 = vmatprep.subr.mxu0 0.0
    %102 = vmatpush1.msra.mxu0 0.0
    %103 = vmatprep.subr.mxu0 0.0
    %104 = vmatpush1.msra.mxu0 0.0
    %105 = vmatprep.subr.mxu0 0.0
    %106 = vmatpush1.msra.mxu0 0.0
    %107 = vmatprep.subr.mxu0 0.0
    %108 = vmatpush1.msra.mxu0 0.0
    %109 = vmatprep.subr.mxu0 0.0
    %110 = vmatpush1.msra.mxu0 0.0
    %111 = vmatprep.subr.mxu0 0.0
    %112 = vmatpush1.msra.mxu0 0.0
    %113 = vmatprep.subr.mxu0 0.0
    %114 = vmatpush1.msra.mxu0 0.0
    %115 = vmatprep.subr.mxu0 0.0
    %116 = vmatpush1.msra.mxu0 0.0
    %117 = vmatprep.subr.mxu0 0.0
    %118 = vmatpush1.msra.mxu0 0.0
    %119 = vmatprep.mubr.f32.mxu0 0.0
    %v120 = vand.u32 %v48, 4294901760
    %v121 = vsub.f32 %v48, %v120
    %v122 = vand.u32 %v121, 4294901760
    %v123 = vsub.f32 %v121, %v122
    %v124 = vand.u32 %v123, 4294901760
    %125 = vmatmul.mubr.f32.gmra.mrb[0].mxu0 %v124
    %v126 = vpop.f32.mrb[0].mxu0
    %v127 = vadd.f32 0.0, %v126
    %v128 = vpop.f32.mrb[0].mxu0
    %129 = vdwg.mxu0
    %130 = vmatprep.subr.mxu0 0.0
    %v131 = vand.u32 %v52, 4294901760
    %v132 = vsub.f32 %v52, %v131
    %v133 = vand.u32 %v132, 4294901760
    %v134 = vsub.f32 %v132, %v133
    %v135 = vand.u32 %v134, 4294901760
    %136 = vmatpush1.msra.mxu0 %v135
    %137 = vmatprep.subr.mxu0 0.0
    %138 = vmatpush1.msra.mxu0 0.0
    %139 = vmatprep.subr.mxu0 0.0
    %140 = vmatpush1.msra.mxu0 0.0
    %141 = vmatprep.subr.mxu0 0.0
    %142 = vmatpush1.msra.mxu0 0.0
    %143 = vmatprep.subr.mxu0 0.0
    %144 = vmatpush1.msra.mxu0 0.0
    %145 = vmatprep.subr.mxu0 0.0
    %146 = vmatpush1.msra.mxu0 0.0
    %147 = vmatprep.subr.mxu0 0.0
    %148 = vmatpush1.msra.mxu0 0.0
    %149 = vmatprep.subr.mxu0 0.0
    %150 = vmatpush1.msra.mxu0 0.0
    %151 = vmatprep.subr.mxu0 0.0
    %152 = vmatpush1.msra.mxu0 0.0
    %153 = vmatprep.subr.mxu0 0.0
    %154 = vmatpush1.msra.mxu0 0.0
    %155 = vmatprep.subr.mxu0 0.0
    %156 = vmatpush1.msra.mxu0 0.0
    %157 = vmatprep.subr.mxu0 0.0
    %158 = vmatpush1.msra.mxu0 0.0
    %159 = vmatprep.subr.mxu0 0.0
    %160 = vmatpush1.msra.mxu0 0.0
    %161 = vmatprep.subr.mxu0 0.0
    %162 = vmatpush1.msra.mxu0 0.0
    %163 = vmatprep.subr.mxu0 0.0
    %164 = vmatpush1.msra.mxu0 0.0
    %165 = vmatprep.subr.mxu0 0.0
    %166 = vmatpush1.msra.mxu0 0.0
    %167 = vmatprep.subr.mxu0 0.0
    %168 = vmatpush1.msra.mxu0 0.0
    %169 = vmatprep.subr.mxu0 0.0
    %170 = vmatpush1.msra.mxu0 0.0
    %171 = vmatprep.subr.mxu0 0.0
    %172 = vmatpush1.msra.mxu0 0.0
    %173 = vmatprep.subr.mxu0 0.0
    %174 = vmatpush1.msra.mxu0 0.0
    %175 = vmatprep.subr.mxu0 0.0
    %176 = vmatpush1.msra.mxu0 0.0
    %177 = vmatprep.subr.mxu0 0.0
    %178 = vmatpush1.msra.mxu0 0.0
    %179 = vmatprep.subr.mxu0 0.0
    %180 = vmatpush1.msra.mxu0 0.0
    %181 = vmatprep.subr.mxu0 0.0
    %182 = vmatpush1.msra.mxu0 0.0
    %183 = vmatprep.subr.mxu0 0.0
    %184 = vmatpush1.msra.mxu0 0.0
    %185 = vmatprep.subr.mxu0 0.0
    %186 = vmatpush1.msra.mxu0 0.0
    %187 = vmatprep.subr.mxu0 0.0
    %188 = vmatpush1.msra.mxu0 0.0
    %189 = vmatprep.subr.mxu0 0.0
    %190 = vmatpush1.msra.mxu0 0.0
    %191 = vmatprep.subr.mxu0 0.0
    %192 = vmatpush1.msra.mxu0 0.0
    %193 = vmatprep.subr.mxu0 0.0
    %194 = vmatpush1.msra.mxu0 0.0
    %195 = vmatprep.subr.mxu0 0.0
    %196 = vmatpush1.msra.mxu0 0.0
    %197 = vmatprep.subr.mxu0 0.0
    %198 = vmatpush1.msra.mxu0 0.0
    %199 = vmatprep.mubr.f32.mxu0 0.0
    %v200 = vand.u32 %v48, 4294901760
    %201 = vmatmul.mubr.f32.gmra.mrb[0].mxu0 %v200
    %v202 = vpop.f32.mrb[0].mxu0
    %v203 = vadd.f32 %v127, %v202
    %v204 = vpop.f32.mrb[0].mxu0
    %205 = vdwg.mxu0
    %206 = vmatprep.subr.mxu0 0.0
    %v207 = vand.u32 %v52, 4294901760
    %v208 = vsub.f32 %v52, %v207
    %209 = vmatpush1.msra.mxu0 %v208
    %210 = vmatprep.subr.mxu0 0.0
    %211 = vmatpush1.msra.mxu0 0.0
    %212 = vmatprep.subr.mxu0 0.0
    %213 = vmatpush1.msra.mxu0 0.0
    %214 = vmatprep.subr.mxu0 0.0
    %215 = vmatpush1.msra.mxu0 0.0
    %216 = vmatprep.subr.mxu0 0.0
    %217 = vmatpush1.msra.mxu0 0.0
    %218 = vmatprep.subr.mxu0 0.0
    %219 = vmatpush1.msra.mxu0 0.0
    %220 = vmatprep.subr.mxu0 0.0
    %221 = vmatpush1.msra.mxu0 0.0
    %222 = vmatprep.subr.mxu0 0.0
    %223 = vmatpush1.msra.mxu0 0.0
    %224 = vmatprep.subr.mxu0 0.0
    %225 = vmatpush1.msra.mxu0 0.0
    %226 = vmatprep.subr.mxu0 0.0
    %227 = vmatpush1.msra.mxu0 0.0
    %228 = vmatprep.subr.mxu0 0.0
    %229 = vmatpush1.msra.mxu0 0.0
    %230 = vmatprep.subr.mxu0 0.0
    %231 = vmatpush1.msra.mxu0 0.0
    %232 = vmatprep.subr.mxu0 0.0
    %233 = vmatpush1.msra.mxu0 0.0
    %234 = vmatprep.subr.mxu0 0.0
    %235 = vmatpush1.msra.mxu0 0.0
    %236 = vmatprep.subr.mxu0 0.0
    %237 = vmatpush1.msra.mxu0 0.0
    %238 = vmatprep.subr.mxu0 0.0
    %239 = vmatpush1.msra.mxu0 0.0
    %240 = vmatprep.subr.mxu0 0.0
    %241 = vmatpush1.msra.mxu0 0.0
    %242 = vmatprep.subr.mxu0 0.0
    %243 = vmatpush1.msra.mxu0 0.0
    %244 = vmatprep.subr.mxu0 0.0
    %245 = vmatpush1.msra.mxu0 0.0
    %246 = vmatprep.subr.mxu0 0.0
    %247 = vmatpush1.msra.mxu0 0.0
    %248 = vmatprep.subr.mxu0 0.0
    %249 = vmatpush1.msra.mxu0 0.0
    %250 = vmatprep.subr.mxu0 0.0
    %251 = vmatpush1.msra.mxu0 0.0
    %252 = vmatprep.subr.mxu0 0.0
    %253 = vmatpush1.msra.mxu0 0.0
    %254 = vmatprep.subr.mxu0 0.0
    %255 = vmatpush1.msra.mxu0 0.0
    %256 = vmatprep.subr.mxu0 0.0
    %257 = vmatpush1.msra.mxu0 0.0
    %258 = vmatprep.subr.mxu0 0.0
    %259 = vmatpush1.msra.mxu0 0.0
    %260 = vmatprep.subr.mxu0 0.0
    %261 = vmatpush1.msra.mxu0 0.0
    %262 = vmatprep.subr.mxu0 0.0
    %263 = vmatpush1.msra.mxu0 0.0
    %264 = vmatprep.subr.mxu0 0.0
    %265 = vmatpush1.msra.mxu0 0.0
    %266 = vmatprep.subr.mxu0 0.0
    %267 = vmatpush1.msra.mxu0 0.0
    %268 = vmatprep.subr.mxu0 0.0
    %269 = vmatpush1.msra.mxu0 0.0
    %270 = vmatprep.subr.mxu0 0.0
    %271 = vmatpush1.msra.mxu0 0.0
    %272 = vmatprep.mubr.f32.mxu0 0.0
    %v273 = vand.u32 %v48, 4294901760
    %v274 = vsub.f32 %v48, %v273
    %275 = vmatmul.mubr.f32.gmra.mrb[0].mxu0 %v274
    %v276 = vpop.f32.mrb[0].mxu0
    %v277 = vadd.f32 %v203, %v276
    %v278 = vpop.f32.mrb[0].mxu0
    %279 = vdwg.mxu0
    %280 = vmatprep.subr.mxu0 0.0
    %v281 = vand.u32 %v52, 4294901760
    %282 = vmatpush1.msra.mxu0 %v281
    %283 = vmatprep.subr.mxu0 0.0
    %284 = vmatpush1.msra.mxu0 0.0
    %285 = vmatprep.subr.mxu0 0.0
    %286 = vmatpush1.msra.mxu0 0.0
    %287 = vmatprep.subr.mxu0 0.0
    %288 = vmatpush1.msra.mxu0 0.0
    %289 = vmatprep.subr.mxu0 0.0
    %290 = vmatpush1.msra.mxu0 0.0
    %291 = vmatprep.subr.mxu0 0.0
    %292 = vmatpush1.msra.mxu0 0.0
    %293 = vmatprep.subr.mxu0 0.0
    %294 = vmatpush1.msra.mxu0 0.0
    %295 = vmatprep.subr.mxu0 0.0
    %296 = vmatpush1.msra.mxu0 0.0
    %297 = vmatprep.subr.mxu0 0.0
    %298 = vmatpush1.msra.mxu0 0.0
    %299 = vmatprep.subr.mxu0 0.0
    %300 = vmatpush1.msra.mxu0 0.0
    %301 = vmatprep.subr.mxu0 0.0
    %302 = vmatpush1.msra.mxu0 0.0
    %303 = vmatprep.subr.mxu0 0.0
    %304 = vmatpush1.msra.mxu0 0.0
    %305 = vmatprep.subr.mxu0 0.0
    %306 = vmatpush1.msra.mxu0 0.0
    %307 = vmatprep.subr.mxu0 0.0
    %308 = vmatpush1.msra.mxu0 0.0
    %309 = vmatprep.subr.mxu0 0.0
    %310 = vmatpush1.msra.mxu0 0.0
    %311 = vmatprep.subr.mxu0 0.0
    %312 = vmatpush1.msra.mxu0 0.0
    %313 = vmatprep.subr.mxu0 0.0
    %314 = vmatpush1.msra.mxu0 0.0
    %315 = vmatprep.subr.mxu0 0.0
    %316 = vmatpush1.msra.mxu0 0.0
    %317 = vmatprep.subr.mxu0 0.0
    %318 = vmatpush1.msra.mxu0 0.0
    %319 = vmatprep.subr.mxu0 0.0
    %320 = vmatpush1.msra.mxu0 0.0
    %321 = vmatprep.subr.mxu0 0.0
    %322 = vmatpush1.msra.mxu0 0.0
    %323 = vmatprep.subr.mxu0 0.0
    %324 = vmatpush1.msra.mxu0 0.0
    %325 = vmatprep.subr.mxu0 0.0
    %326 = vmatpush1.msra.mxu0 0.0
    %327 = vmatprep.subr.mxu0 0.0
    %328 = vmatpush1.msra.mxu0 0.0
    %329 = vmatprep.subr.mxu0 0.0
    %330 = vmatpush1.msra.mxu0 0.0
    %331 = vmatprep.subr.mxu0 0.0
    %332 = vmatpush1.msra.mxu0 0.0
    %333 = vmatprep.subr.mxu0 0.0
    %334 = vmatpush1.msra.mxu0 0.0
    %335 = vmatprep.subr.mxu0 0.0
    %336 = vmatpush1.msra.mxu0 0.0
    %337 = vmatprep.subr.mxu0 0.0
    %338 = vmatpush1.msra.mxu0 0.0
    %339 = vmatprep.subr.mxu0 0.0
    %340 = vmatpush1.msra.mxu0 0.0
    %341 = vmatprep.subr.mxu0 0.0
    %342 = vmatpush1.msra.mxu0 0.0
    %343 = vmatprep.subr.mxu0 0.0
    %344 = vmatpush1.msra.mxu0 0.0
    %345 = vmatprep.mubr.f32.mxu0 0.0
    %v346 = vand.u32 %v48, 4294901760
    %v347 = vsub.f32 %v48, %v346
    %v348 = vand.u32 %v347, 4294901760
    %349 = vmatmul.mubr.f32.gmra.mrb[0].mxu0 %v348
    %v350 = vpop.f32.mrb[0].mxu0
    %v351 = vadd.f32 %v277, %v350
    %v352 = vpop.f32.mrb[0].mxu0
    %353 = vdwg.mxu0
    %354 = vmatprep.subr.mxu0 0.0
    %v355 = vand.u32 %v52, 4294901760
    %v356 = vsub.f32 %v52, %v355
    %v357 = vand.u32 %v356, 4294901760
    %358 = vmatpush1.msra.mxu0 %v357
    %359 = vmatprep.subr.mxu0 0.0
    %360 = vmatpush1.msra.mxu0 0.0
    %361 = vmatprep.subr.mxu0 0.0
    %362 = vmatpush1.msra.mxu0 0.0
    %363 = vmatprep.subr.mxu0 0.0
    %364 = vmatpush1.msra.mxu0 0.0
    %365 = vmatprep.subr.mxu0 0.0
    %366 = vmatpush1.msra.mxu0 0.0
    %367 = vmatprep.subr.mxu0 0.0
    %368 = vmatpush1.msra.mxu0 0.0
    %369 = vmatprep.subr.mxu0 0.0
    %370 = vmatpush1.msra.mxu0 0.0
    %371 = vmatprep.subr.mxu0 0.0
    %372 = vmatpush1.msra.mxu0 0.0
    %373 = vmatprep.subr.mxu0 0.0
    %374 = vmatpush1.msra.mxu0 0.0
    %375 = vmatprep.subr.mxu0 0.0
    %376 = vmatpush1.msra.mxu0 0.0
    %377 = vmatprep.subr.mxu0 0.0
    %378 = vmatpush1.msra.mxu0 0.0
    %379 = vmatprep.subr.mxu0 0.0
    %380 = vmatpush1.msra.mxu0 0.0
    %381 = vmatprep.subr.mxu0 0.0
    %382 = vmatpush1.msra.mxu0 0.0
    %383 = vmatprep.subr.mxu0 0.0
    %384 = vmatpush1.msra.mxu0 0.0
    %385 = vmatprep.subr.mxu0 0.0
    %386 = vmatpush1.msra.mxu0 0.0
    %387 = vmatprep.subr.mxu0 0.0
    %388 = vmatpush1.msra.mxu0 0.0
    %389 = vmatprep.subr.mxu0 0.0
    %390 = vmatpush1.msra.mxu0 0.0
    %391 = vmatprep.subr.mxu0 0.0
    %392 = vmatpush1.msra.mxu0 0.0
    %393 = vmatprep.subr.mxu0 0.0
    %394 = vmatpush1.msra.mxu0 0.0
    %395 = vmatprep.subr.mxu0 0.0
    %396 = vmatpush1.msra.mxu0 0.0
    %397 = vmatprep.subr.mxu0 0.0
    %398 = vmatpush1.msra.mxu0 0.0
    %399 = vmatprep.subr.mxu0 0.0
    %400 = vmatpush1.msra.mxu0 0.0
    %401 = vmatprep.subr.mxu0 0.0
    %402 = vmatpush1.msra.mxu0 0.0
    %403 = vmatprep.subr.mxu0 0.0
    %404 = vmatpush1.msra.mxu0 0.0
    %405 = vmatprep.subr.mxu0 0.0
    %406 = vmatpush1.msra.mxu0 0.0
    %407 = vmatprep.subr.mxu0 0.0
    %408 = vmatpush1.msra.mxu0 0.0
    %409 = vmatprep.subr.mxu0 0.0
    %410 = vmatpush1.msra.mxu0 0.0
    %411 = vmatprep.subr.mxu0 0.0
    %412 = vmatpush1.msra.mxu0 0.0
    %413 = vmatprep.subr.mxu0 0.0
    %414 = vmatpush1.msra.mxu0 0.0
    %415 = vmatprep.subr.mxu0 0.0
    %416 = vmatpush1.msra.mxu0 0.0
    %417 = vmatprep.subr.mxu0 0.0
    %418 = vmatpush1.msra.mxu0 0.0
    %419 = vmatprep.subr.mxu0 0.0
    %420 = vmatpush1.msra.mxu0 0.0
    %421 = vmatprep.mubr.f32.mxu0 0.0
    %v422 = vand.u32 %v48, 4294901760
    %423 = vmatmul.mubr.f32.gmra.mrb[0].mxu0 %v422
    %v424 = vpop.f32.mrb[0].mxu0
    %v425 = vadd.f32 %v351, %v424
    %v426 = vpop.f32.mrb[0].mxu0
    %427 = vdwg.mxu0
    %428 = vmatprep.subr.mxu0 0.0
    %v429 = vand.u32 %v52, 4294901760
    %430 = vmatpush1.msra.mxu0 %v429
    %431 = vmatprep.subr.mxu0 0.0
    %432 = vmatpush1.msra.mxu0 0.0
    %433 = vmatprep.subr.mxu0 0.0
    %434 = vmatpush1.msra.mxu0 0.0
    %435 = vmatprep.subr.mxu0 0.0
    %436 = vmatpush1.msra.mxu0 0.0
    %437 = vmatprep.subr.mxu0 0.0
    %438 = vmatpush1.msra.mxu0 0.0
    %439 = vmatprep.subr.mxu0 0.0
    %440 = vmatpush1.msra.mxu0 0.0
    %441 = vmatprep.subr.mxu0 0.0
    %442 = vmatpush1.msra.mxu0 0.0
    %443 = vmatprep.subr.mxu0 0.0
    %444 = vmatpush1.msra.mxu0 0.0
    %445 = vmatprep.subr.mxu0 0.0
    %446 = vmatpush1.msra.mxu0 0.0
    %447 = vmatprep.subr.mxu0 0.0
    %448 = vmatpush1.msra.mxu0 0.0
    %449 = vmatprep.subr.mxu0 0.0
    %450 = vmatpush1.msra.mxu0 0.0
    %451 = vmatprep.subr.mxu0 0.0
    %452 = vmatpush1.msra.mxu0 0.0
    %453 = vmatprep.subr.mxu0 0.0
    %454 = vmatpush1.msra.mxu0 0.0
    %455 = vmatprep.subr.mxu0 0.0
    %456 = vmatpush1.msra.mxu0 0.0
    %457 = vmatprep.subr.mxu0 0.0
    %458 = vmatpush1.msra.mxu0 0.0
    %459 = vmatprep.subr.mxu0 0.0
    %460 = vmatpush1.msra.mxu0 0.0
    %461 = vmatprep.subr.mxu0 0.0
    %462 = vmatpush1.msra.mxu0 0.0
    %463 = vmatprep.subr.mxu0 0.0
    %464 = vmatpush1.msra.mxu0 0.0
    %465 = vmatprep.subr.mxu0 0.0
    %466 = vmatpush1.msra.mxu0 0.0
    %467 = vmatprep.subr.mxu0 0.0
    %468 = vmatpush1.msra.mxu0 0.0
    %469 = vmatprep.subr.mxu0 0.0
    %470 = vmatpush1.msra.mxu0 0.0
    %471 = vmatprep.subr.mxu0 0.0
    %472 = vmatpush1.msra.mxu0 0.0
    %473 = vmatprep.subr.mxu0 0.0
    %474 = vmatpush1.msra.mxu0 0.0
    %475 = vmatprep.subr.mxu0 0.0
    %476 = vmatpush1.msra.mxu0 0.0
    %477 = vmatprep.subr.mxu0 0.0
    %478 = vmatpush1.msra.mxu0 0.0
    %479 = vmatprep.subr.mxu0 0.0
    %480 = vmatpush1.msra.mxu0 0.0
    %481 = vmatprep.subr.mxu0 0.0
    %482 = vmatpush1.msra.mxu0 0.0
    %483 = vmatprep.subr.mxu0 0.0
    %484 = vmatpush1.msra.mxu0 0.0
    %485 = vmatprep.subr.mxu0 0.0
    %486 = vmatpush1.msra.mxu0 0.0
    %487 = vmatprep.subr.mxu0 0.0
    %488 = vmatpush1.msra.mxu0 0.0
    %489 = vmatprep.subr.mxu0 0.0
    %490 = vmatpush1.msra.mxu0 0.0
    %491 = vmatprep.subr.mxu0 0.0
    %492 = vmatpush1.msra.mxu0 0.0
    %493 = vmatprep.mubr.f32.mxu0 0.0
    %v494 = vand.u32 %v48, 4294901760
    %495 = vmatmul.mubr.f32.gmra.mrb[0].mxu0 %v494
    %v496 = vpop.f32.mrb[0].mxu0
    %v497 = vadd.f32 %v425, %v496
    %v498 = vpop.f32.mrb[0].mxu0
    %499 = vdwg.mxu0
    %v500 = vtanh.pop %v497
    %v501 = vlaneseq
    %v502 = vshrl.u32 %v501, 7
    %v503 = vsub.s32 4, %v502
    %v504 = vrot.slane %v45, %v503
    %v505 = vmul.f32 %v500, %v504
    %507 = vrot.lane.b32.xlu0 %v505, 119
    %v508 = vpop.permute.xlu0 %507
    %vm510 = vcmask 21504
    %v511 = vsel %vm510, %v508, 0.0
    %512 = vadd.xlane.f32.xlu0 %v511
    %v513 = vpop.xlane.xlu0 %512
    %v514 = vsub.f32 0.0, %v513
    %v515 = vmul.f32 %v514, 1.442695
    %v516 = vpow.pop %v515
    %v517 = vadd.f32 %v516, 1.0
    %v518 = vrcp.pop %v517
    %v519 = vmul.f32 1.0, %v518
    %v520 = vmul.f32 %v519, 5.0
    %v521 = vcvt.f32.s32.to.zero.pseudo %v520
    %v522 = vld [vmem:[#allocation2] sm:$0xff]
    %v523 = vld [vmem:[#allocation2 + $0x8] sm:$0x1]
    %vm524 = vcmask 72704
    %v526 = vsel %vm524, %v497, 0
    %vm528 = vcmask 1040384
    %v530 = vsel %vm528, %v523, 0
    %532 = vmatprep.subr.mxu0 0.0
    %v533 = vand.u32 %v522, 4294901760
    %534 = vmatpush1.msra.mxu0 %v533
    %535 = vmatprep.subr.mxu0 0.0
    %v536 = vand.u32 %v530, 4294901760
    %537 = vmatpush1.msra.mxu0 %v536
    %538 = vmatprep.subr.mxu0 0.0
    %539 = vmatpush1.msra.mxu0 0.0
    %540 = vmatprep.subr.mxu0 0.0
    %541 = vmatpush1.msra.mxu0 0.0
    %542 = vmatprep.subr.mxu0 0.0
    %543 = vmatpush1.msra.mxu0 0.0
    %544 = vmatprep.subr.mxu0 0.0
    %545 = vmatpush1.msra.mxu0 0.0
    %546 = vmatprep.subr.mxu0 0.0
    %547 = vmatpush1.msra.mxu0 0.0
    %548 = vmatprep.subr.mxu0 0.0
    %549 = vmatpush1.msra.mxu0 0.0
    %550 = vmatprep.subr.mxu0 0.0
    %551 = vmatpush1.msra.mxu0 0.0
    %552 = vmatprep.subr.mxu0 0.0
    %553 = vmatpush1.msra.mxu0 0.0
    %554 = vmatprep.subr.mxu0 0.0
    %555 = vmatpush1.msra.mxu0 0.0
    %556 = vmatprep.subr.mxu0 0.0
    %557 = vmatpush1.msra.mxu0 0.0
    %558 = vmatprep.subr.mxu0 0.0
    %559 = vmatpush1.msra.mxu0 0.0
    %560 = vmatprep.subr.mxu0 0.0
    %561 = vmatpush1.msra.mxu0 0.0
    %562 = vmatprep.subr.mxu0 0.0
    %563 = vmatpush1.msra.mxu0 0.0
    %564 = vmatprep.subr.mxu0 0.0
    %565 = vmatpush1.msra.mxu0 0.0
    %566 = vmatprep.subr.mxu0 0.0
    %567 = vmatpush1.msra.mxu0 0.0
    %568 = vmatprep.subr.mxu0 0.0
    %569 = vmatpush1.msra.mxu0 0.0
    %570 = vmatprep.subr.mxu0 0.0
    %571 = vmatpush1.msra.mxu0 0.0
    %572 = vmatprep.subr.mxu0 0.0
    %573 = vmatpush1.msra.mxu0 0.0
    %574 = vmatprep.subr.mxu0 0.0
    %575 = vmatpush1.msra.mxu0 0.0
    %576 = vmatprep.subr.mxu0 0.0
    %577 = vmatpush1.msra.mxu0 0.0
    %578 = vmatprep.subr.mxu0 0.0
    %579 = vmatpush1.msra.mxu0 0.0
    %580 = vmatprep.subr.mxu0 0.0
    %581 = vmatpush1.msra.mxu0 0.0
    %582 = vmatprep.subr.mxu0 0.0
    %583 = vmatpush1.msra.mxu0 0.0
    %584 = vmatprep.subr.mxu0 0.0
    %585 = vmatpush1.msra.mxu0 0.0
    %586 = vmatprep.subr.mxu0 0.0
    %587 = vmatpush1.msra.mxu0 0.0
    %588 = vmatprep.subr.mxu0 0.0
    %589 = vmatpush1.msra.mxu0 0.0
    %590 = vmatprep.subr.mxu0 0.0
    %591 = vmatpush1.msra.mxu0 0.0
    %592 = vmatprep.subr.mxu0 0.0
    %593 = vmatpush1.msra.mxu0 0.0
    %594 = vmatprep.subr.mxu0 0.0
    %595 = vmatpush1.msra.mxu0 0.0
    %596 = vmatprep.subr.mxu0 0.0
    %597 = vmatpush1.msra.mxu0 0.0
    %598 = vmatprep.mubr.f32.mxu0 0.0
    %v599 = vand.u32 %v526, 4294901760
    %v600 = vsub.f32 %v526, %v599
    %v601 = vand.u32 %v600, 4294901760
    %v602 = vsub.f32 %v600, %v601
    %v603 = vand.u32 %v602, 4294901760
    %604 = vmatmul.mubr.f32.gmra.mrb[0].mxu0 %v603
    %v605 = vpop.f32.mrb[0].mxu0
    %v606 = vadd.f32 0.0, %v605
    %v607 = vpop.f32.mrb[0].mxu0
    %608 = vdwg.mxu0
    %609 = vmatprep.subr.mxu0 0.0
    %v610 = vand.u32 %v522, 4294901760
    %v611 = vsub.f32 %v522, %v610
    %v612 = vand.u32 %v611, 4294901760
    %v613 = vsub.f32 %v611, %v612
    %v614 = vand.u32 %v613, 4294901760
    %615 = vmatpush1.msra.mxu0 %v614
    %616 = vmatprep.subr.mxu0 0.0
    %v617 = vand.u32 %v530, 4294901760
    %v618 = vsub.f32 %v530, %v617
    %v619 = vand.u32 %v618, 4294901760
    %v620 = vsub.f32 %v618, %v619
    %v621 = vand.u32 %v620, 4294901760
    %622 = vmatpush1.msra.mxu0 %v621
    %623 = vmatprep.subr.mxu0 0.0
    %624 = vmatpush1.msra.mxu0 0.0
    %625 = vmatprep.subr.mxu0 0.0
    %626 = vmatpush1.msra.mxu0 0.0
    %627 = vmatprep.subr.mxu0 0.0
    %628 = vmatpush1.msra.mxu0 0.0
    %629 = vmatprep.subr.mxu0 0.0
    %630 = vmatpush1.msra.mxu0 0.0
    %631 = vmatprep.subr.mxu0 0.0
    %632 = vmatpush1.msra.mxu0 0.0
    %633 = vmatprep.subr.mxu0 0.0
    %634 = vmatpush1.msra.mxu0 0.0
    %635 = vmatprep.subr.mxu0 0.0
    %636 = vmatpush1.msra.mxu0 0.0
    %637 = vmatprep.subr.mxu0 0.0
    %638 = vmatpush1.msra.mxu0 0.0
    %639 = vmatprep.subr.mxu0 0.0
    %640 = vmatpush1.msra.mxu0 0.0
    %641 = vmatprep.subr.mxu0 0.0
    %642 = vmatpush1.msra.mxu0 0.0
    %643 = vmatprep.subr.mxu0 0.0
    %644 = vmatpush1.msra.mxu0 0.0
    %645 = vmatprep.subr.mxu0 0.0
    %646 = vmatpush1.msra.mxu0 0.0
    %647 = vmatprep.subr.mxu0 0.0
    %648 = vmatpush1.msra.mxu0 0.0
    %649 = vmatprep.subr.mxu0 0.0
    %650 = vmatpush1.msra.mxu0 0.0
    %651 = vmatprep.subr.mxu0 0.0
    %652 = vmatpush1.msra.mxu0 0.0
    %653 = vmatprep.subr.mxu0 0.0
    %654 = vmatpush1.msra.mxu0 0.0
    %655 = vmatprep.subr.mxu0 0.0
    %656 = vmatpush1.msra.mxu0 0.0
    %657 = vmatprep.subr.mxu0 0.0
    %658 = vmatpush1.msra.mxu0 0.0
    %659 = vmatprep.subr.mxu0 0.0
    %660 = vmatpush1.msra.mxu0 0.0
    %661 = vmatprep.subr.mxu0 0.0
    %662 = vmatpush1.msra.mxu0 0.0
    %663 = vmatprep.subr.mxu0 0.0
    %664 = vmatpush1.msra.mxu0 0.0
    %665 = vmatprep.subr.mxu0 0.0
    %666 = vmatpush1.msra.mxu0 0.0
    %667 = vmatprep.subr.mxu0 0.0
    %668 = vmatpush1.msra.mxu0 0.0
    %669 = vmatprep.subr.mxu0 0.0
    %670 = vmatpush1.msra.mxu0 0.0
    %671 = vmatprep.subr.mxu0 0.0
    %672 = vmatpush1.msra.mxu0 0.0
    %673 = vmatprep.subr.mxu0 0.0
    %674 = vmatpush1.msra.mxu0 0.0
    %675 = vmatprep.subr.mxu0 0.0
    %676 = vmatpush1.msra.mxu0 0.0
    %677 = vmatprep.subr.mxu0 0.0
    %678 = vmatpush1.msra.mxu0 0.0
    %679 = vmatprep.subr.mxu0 0.0
    %680 = vmatpush1.msra.mxu0 0.0
    %681 = vmatprep.subr.mxu0 0.0
    %682 = vmatpush1.msra.mxu0 0.0
    %683 = vmatprep.mubr.f32.mxu0 0.0
    %v684 = vand.u32 %v526, 4294901760
    %685 = vmatmul.mubr.f32.gmra.mrb[0].mxu0 %v684
    %v686 = vpop.f32.mrb[0].mxu0
    %v687 = vadd.f32 %v606, %v686
    %v688 = vpop.f32.mrb[0].mxu0
    %689 = vdwg.mxu0
    %690 = vmatprep.subr.mxu0 0.0
    %v691 = vand.u32 %v522, 4294901760
    %v692 = vsub.f32 %v522, %v691
    %693 = vmatpush1.msra.mxu0 %v692
    %694 = vmatprep.subr.mxu0 0.0
    %v695 = vand.u32 %v530, 4294901760
    %v696 = vsub.f32 %v530, %v695
    %697 = vmatpush1.msra.mxu0 %v696
    %698 = vmatprep.subr.mxu0 0.0
    %699 = vmatpush1.msra.mxu0 0.0
    %700 = vmatprep.subr.mxu0 0.0
    %701 = vmatpush1.msra.mxu0 0.0
    %702 = vmatprep.subr.mxu0 0.0
    %703 = vmatpush1.msra.mxu0 0.0
    %704 = vmatprep.subr.mxu0 0.0
    %705 = vmatpush1.msra.mxu0 0.0
    %706 = vmatprep.subr.mxu0 0.0
    %707 = vmatpush1.msra.mxu0 0.0
    %708 = vmatprep.subr.mxu0 0.0
    %709 = vmatpush1.msra.mxu0 0.0
    %710 = vmatprep.subr.mxu0 0.0
    %711 = vmatpush1.msra.mxu0 0.0
    %712 = vmatprep.subr.mxu0 0.0
    %713 = vmatpush1.msra.mxu0 0.0
    %714 = vmatprep.subr.mxu0 0.0
    %715 = vmatpush1.msra.mxu0 0.0
    %716 = vmatprep.subr.mxu0 0.0
    %717 = vmatpush1.msra.mxu0 0.0
    %718 = vmatprep.subr.mxu0 0.0
    %719 = vmatpush1.msra.mxu0 0.0
    %720 = vmatprep.subr.mxu0 0.0
    %721 = vmatpush1.msra.mxu0 0.0
    %722 = vmatprep.subr.mxu0 0.0
    %723 = vmatpush1.msra.mxu0 0.0
    %724 = vmatprep.subr.mxu0 0.0
    %725 = vmatpush1.msra.mxu0 0.0
    %726 = vmatprep.subr.mxu0 0.0
    %727 = vmatpush1.msra.mxu0 0.0
    %728 = vmatprep.subr.mxu0 0.0
    %729 = vmatpush1.msra.mxu0 0.0
    %730 = vmatprep.subr.mxu0 0.0
    %731 = vmatpush1.msra.mxu0 0.0
    %732 = vmatprep.subr.mxu0 0.0
    %733 = vmatpush1.msra.mxu0 0.0
    %734 = vmatprep.subr.mxu0 0.0
    %735 = vmatpush1.msra.mxu0 0.0
    %736 = vmatprep.subr.mxu0 0.0
    %737 = vmatpush1.msra.mxu0 0.0
    %738 = vmatprep.subr.mxu0 0.0
    %739 = vmatpush1.msra.mxu0 0.0
    %740 = vmatprep.subr.mxu0 0.0
    %741 = vmatpush1.msra.mxu0 0.0
    %742 = vmatprep.subr.mxu0 0.0
    %743 = vmatpush1.msra.mxu0 0.0
    %744 = vmatprep.subr.mxu0 0.0
    %745 = vmatpush1.msra.mxu0 0.0
    %746 = vmatprep.subr.mxu0 0.0
    %747 = vmatpush1.msra.mxu0 0.0
    %748 = vmatprep.subr.mxu0 0.0
    %749 = vmatpush1.msra.mxu0 0.0
    %750 = vmatprep.subr.mxu0 0.0
    %751 = vmatpush1.msra.mxu0 0.0
    %752 = vmatprep.subr.mxu0 0.0
    %753 = vmatpush1.msra.mxu0 0.0
    %754 = vmatprep.subr.mxu0 0.0
    %755 = vmatpush1.msra.mxu0 0.0
    %756 = vmatprep.subr.mxu0 0.0
    %757 = vmatpush1.msra.mxu0 0.0
    %758 = vmatprep.mubr.f32.mxu0 0.0
    %v759 = vand.u32 %v526, 4294901760
    %v760 = vsub.f32 %v526, %v759
    %761 = vmatmul.mubr.f32.gmra.mrb[0].mxu0 %v760
    %v762 = vpop.f32.mrb[0].mxu0
    %v763 = vadd.f32 %v687, %v762
    %v764 = vpop.f32.mrb[0].mxu0
    %765 = vdwg.mxu0
    %766 = vmatprep.subr.mxu0 0.0
    %v767 = vand.u32 %v522, 4294901760
    %768 = vmatpush1.msra.mxu0 %v767
    %769 = vmatprep.subr.mxu0 0.0
    %v770 = vand.u32 %v530, 4294901760
    %771 = vmatpush1.msra.mxu0 %v770
    %772 = vmatprep.subr.mxu0 0.0
    %773 = vmatpush1.msra.mxu0 0.0
    %774 = vmatprep.subr.mxu0 0.0
    %775 = vmatpush1.msra.mxu0 0.0
    %776 = vmatprep.subr.mxu0 0.0
    %777 = vmatpush1.msra.mxu0 0.0
    %778 = vmatprep.subr.mxu0 0.0
    %779 = vmatpush1.msra.mxu0 0.0
    %780 = vmatprep.subr.mxu0 0.0
    %781 = vmatpush1.msra.mxu0 0.0
    %782 = vmatprep.subr.mxu0 0.0
    %783 = vmatpush1.msra.mxu0 0.0
    %784 = vmatprep.subr.mxu0 0.0
    %785 = vmatpush1.msra.mxu0 0.0
    %786 = vmatprep.subr.mxu0 0.0
    %787 = vmatpush1.msra.mxu0 0.0
    %788 = vmatprep.subr.mxu0 0.0
    %789 = vmatpush1.msra.mxu0 0.0
    %790 = vmatprep.subr.mxu0 0.0
    %791 = vmatpush1.msra.mxu0 0.0
    %792 = vmatprep.subr.mxu0 0.0
    %793 = vmatpush1.msra.mxu0 0.0
    %794 = vmatprep.subr.mxu0 0.0
    %795 = vmatpush1.msra.mxu0 0.0
    %796 = vmatprep.subr.mxu0 0.0
    %797 = vmatpush1.msra.mxu0 0.0
    %798 = vmatprep.subr.mxu0 0.0
    %799 = vmatpush1.msra.mxu0 0.0
    %800 = vmatprep.subr.mxu0 0.0
    %801 = vmatpush1.msra.mxu0 0.0
    %802 = vmatprep.subr.mxu0 0.0
    %803 = vmatpush1.msra.mxu0 0.0
    %804 = vmatprep.subr.mxu0 0.0
    %805 = vmatpush1.msra.mxu0 0.0
    %806 = vmatprep.subr.mxu0 0.0
    %807 = vmatpush1.msra.mxu0 0.0
    %808 = vmatprep.subr.mxu0 0.0
    %809 = vmatpush1.msra.mxu0 0.0
    %810 = vmatprep.subr.mxu0 0.0
    %811 = vmatpush1.msra.mxu0 0.0
    %812 = vmatprep.subr.mxu0 0.0
    %813 = vmatpush1.msra.mxu0 0.0
    %814 = vmatprep.subr.mxu0 0.0
    %815 = vmatpush1.msra.mxu0 0.0
    %816 = vmatprep.subr.mxu0 0.0
    %817 = vmatpush1.msra.mxu0 0.0
    %818 = vmatprep.subr.mxu0 0.0
    %819 = vmatpush1.msra.mxu0 0.0
    %820 = vmatprep.subr.mxu0 0.0
    %821 = vmatpush1.msra.mxu0 0.0
    %822 = vmatprep.subr.mxu0 0.0
    %823 = vmatpush1.msra.mxu0 0.0
    %824 = vmatprep.subr.mxu0 0.0
    %825 = vmatpush1.msra.mxu0 0.0
    %826 = vmatprep.subr.mxu0 0.0
    %827 = vmatpush1.msra.mxu0 0.0
    %828 = vmatprep.subr.mxu0 0.0
    %829 = vmatpush1.msra.mxu0 0.0
    %830 = vmatprep.subr.mxu0 0.0
    %831 = vmatpush1.msra.mxu0 0.0
    %832 = vmatprep.mubr.f32.mxu0 0.0
    %v833 = vand.u32 %v526, 4294901760
    %v834 = vsub.f32 %v526, %v833
    %v835 = vand.u32 %v834, 4294901760
    %836 = vmatmul.mubr.f32.gmra.mrb[0].mxu0 %v835
    %v837 = vpop.f32.mrb[0].mxu0
    %v838 = vadd.f32 %v763, %v837
    %v839 = vpop.f32.mrb[0].mxu0
    %840 = vdwg.mxu0
    %841 = vmatprep.subr.mxu0 0.0
    %v842 = vand.u32 %v522, 4294901760
    %v843 = vsub.f32 %v522, %v842
    %v844 = vand.u32 %v843, 4294901760
    %845 = vmatpush1.msra.mxu0 %v844
    %846 = vmatprep.subr.mxu0 0.0
    %v847 = vand.u32 %v530, 4294901760
    %v848 = vsub.f32 %v530, %v847
    %v849 = vand.u32 %v848, 4294901760
    %850 = vmatpush1.msra.mxu0 %v849
    %851 = vmatprep.subr.mxu0 0.0
    %852 = vmatpush1.msra.mxu0 0.0
    %853 = vmatprep.subr.mxu0 0.0
    %854 = vmatpush1.msra.mxu0 0.0
    %855 = vmatprep.subr.mxu0 0.0
    %856 = vmatpush1.msra.mxu0 0.0
    %857 = vmatprep.subr.mxu0 0.0
    %858 = vmatpush1.msra.mxu0 0.0
    %859 = vmatprep.subr.mxu0 0.0
    %860 = vmatpush1.msra.mxu0 0.0
    %861 = vmatprep.subr.mxu0 0.0
    %862 = vmatpush1.msra.mxu0 0.0
    %863 = vmatprep.subr.mxu0 0.0
    %864 = vmatpush1.msra.mxu0 0.0
    %865 = vmatprep.subr.mxu0 0.0
    %866 = vmatpush1.msra.mxu0 0.0
    %867 = vmatprep.subr.mxu0 0.0
    %868 = vmatpush1.msra.mxu0 0.0
    %869 = vmatprep.subr.mxu0 0.0
    %870 = vmatpush1.msra.mxu0 0.0
    %871 = vmatprep.subr.mxu0 0.0
    %872 = vmatpush1.msra.mxu0 0.0
    %873 = vmatprep.subr.mxu0 0.0
    %874 = vmatpush1.msra.mxu0 0.0
    %875 = vmatprep.subr.mxu0 0.0
    %876 = vmatpush1.msra.mxu0 0.0
    %877 = vmatprep.subr.mxu0 0.0
    %878 = vmatpush1.msra.mxu0 0.0
    %879 = vmatprep.subr.mxu0 0.0
    %880 = vmatpush1.msra.mxu0 0.0
    %881 = vmatprep.subr.mxu0 0.0
    %882 = vmatpush1.msra.mxu0 0.0
    %883 = vmatprep.subr.mxu0 0.0
    %884 = vmatpush1.msra.mxu0 0.0
    %885 = vmatprep.subr.mxu0 0.0
    %886 = vmatpush1.msra.mxu0 0.0
    %887 = vmatprep.subr.mxu0 0.0
    %888 = vmatpush1.msra.mxu0 0.0
    %889 = vmatprep.subr.mxu0 0.0
    %890 = vmatpush1.msra.mxu0 0.0
    %891 = vmatprep.subr.mxu0 0.0
    %892 = vmatpush1.msra.mxu0 0.0
    %893 = vmatprep.subr.mxu0 0.0
    %894 = vmatpush1.msra.mxu0 0.0
    %895 = vmatprep.subr.mxu0 0.0
    %896 = vmatpush1.msra.mxu0 0.0
    %897 = vmatprep.subr.mxu0 0.0
    %898 = vmatpush1.msra.mxu0 0.0
    %899 = vmatprep.subr.mxu0 0.0
    %900 = vmatpush1.msra.mxu0 0.0
    %901 = vmatprep.subr.mxu0 0.0
    %902 = vmatpush1.msra.mxu0 0.0
    %903 = vmatprep.subr.mxu0 0.0
    %904 = vmatpush1.msra.mxu0 0.0
    %905 = vmatprep.subr.mxu0 0.0
    %906 = vmatpush1.msra.mxu0 0.0
    %907 = vmatprep.subr.mxu0 0.0
    %908 = vmatpush1.msra.mxu0 0.0
    %909 = vmatprep.subr.mxu0 0.0
    %910 = vmatpush1.msra.mxu0 0.0
    %911 = vmatprep.mubr.f32.mxu0 0.0
    %v912 = vand.u32 %v526, 4294901760
    %913 = vmatmul.mubr.f32.gmra.mrb[0].mxu0 %v912
    %v914 = vpop.f32.mrb[0].mxu0
    %v915 = vadd.f32 %v838, %v914
    %v916 = vpop.f32.mrb[0].mxu0
    %917 = vdwg.mxu0
    %918 = vmatprep.subr.mxu0 0.0
    %v919 = vand.u32 %v522, 4294901760
    %920 = vmatpush1.msra.mxu0 %v919
    %921 = vmatprep.subr.mxu0 0.0
    %v922 = vand.u32 %v530, 4294901760
    %923 = vmatpush1.msra.mxu0 %v922
    %924 = vmatprep.subr.mxu0 0.0
    %925 = vmatpush1.msra.mxu0 0.0
    %926 = vmatprep.subr.mxu0 0.0
    %927 = vmatpush1.msra.mxu0 0.0
    %928 = vmatprep.subr.mxu0 0.0
    %929 = vmatpush1.msra.mxu0 0.0
    %930 = vmatprep.subr.mxu0 0.0
    %931 = vmatpush1.msra.mxu0 0.0
    %932 = vmatprep.subr.mxu0 0.0
    %933 = vmatpush1.msra.mxu0 0.0
    %934 = vmatprep.subr.mxu0 0.0
    %935 = vmatpush1.msra.mxu0 0.0
    %936 = vmatprep.subr.mxu0 0.0
    %937 = vmatpush1.msra.mxu0 0.0
    %938 = vmatprep.subr.mxu0 0.0
    %939 = vmatpush1.msra.mxu0 0.0
    %940 = vmatprep.subr.mxu0 0.0
    %941 = vmatpush1.msra.mxu0 0.0
    %942 = vmatprep.subr.mxu0 0.0
    %943 = vmatpush1.msra.mxu0 0.0
    %944 = vmatprep.subr.mxu0 0.0
    %945 = vmatpush1.msra.mxu0 0.0
    %946 = vmatprep.subr.mxu0 0.0
    %947 = vmatpush1.msra.mxu0 0.0
    %948 = vmatprep.subr.mxu0 0.0
    %949 = vmatpush1.msra.mxu0 0.0
    %950 = vmatprep.subr.mxu0 0.0
    %951 = vmatpush1.msra.mxu0 0.0
    %952 = vmatprep.subr.mxu0 0.0
    %953 = vmatpush1.msra.mxu0 0.0
    %954 = vmatprep.subr.mxu0 0.0
    %955 = vmatpush1.msra.mxu0 0.0
    %956 = vmatprep.subr.mxu0 0.0
    %957 = vmatpush1.msra.mxu0 0.0
    %958 = vmatprep.subr.mxu0 0.0
    %959 = vmatpush1.msra.mxu0 0.0
    %960 = vmatprep.subr.mxu0 0.0
    %961 = vmatpush1.msra.mxu0 0.0
    %962 = vmatprep.subr.mxu0 0.0
    %963 = vmatpush1.msra.mxu0 0.0
    %964 = vmatprep.subr.mxu0 0.0
    %965 = vmatpush1.msra.mxu0 0.0
    %966 = vmatprep.subr.mxu0 0.0
    %967 = vmatpush1.msra.mxu0 0.0
    %968 = vmatprep.subr.mxu0 0.0
    %969 = vmatpush1.msra.mxu0 0.0
    %970 = vmatprep.subr.mxu0 0.0
    %971 = vmatpush1.msra.mxu0 0.0
    %972 = vmatprep.subr.mxu0 0.0
    %973 = vmatpush1.msra.mxu0 0.0
    %974 = vmatprep.subr.mxu0 0.0
    %975 = vmatpush1.msra.mxu0 0.0
    %976 = vmatprep.subr.mxu0 0.0
    %977 = vmatpush1.msra.mxu0 0.0
    %978 = vmatprep.subr.mxu0 0.0
    %979 = vmatpush1.msra.mxu0 0.0
    %980 = vmatprep.subr.mxu0 0.0
    %981 = vmatpush1.msra.mxu0 0.0
    %982 = vmatprep.subr.mxu0 0.0
    %983 = vmatpush1.msra.mxu0 0.0
    %984 = vmatprep.mubr.f32.mxu0 0.0
    %v985 = vand.u32 %v526, 4294901760
    %986 = vmatmul.mubr.f32.gmra.mrb[0].mxu0 %v985
    %v987 = vpop.f32.mrb[0].mxu0
    %v988 = vadd.f32 %v915, %v987
    %v989 = vpop.f32.mrb[0].mxu0
    %990 = vdwg.mxu0
    %v991 = vlaneseq
    %v992 = vand.u32 %v991, 127
    %v993 = vlaneseq
    %v994 = vshrl.u32 %v993, 7
    %vm995 = vcmp.ge.s32.totalorder %v994, 3
    %v996 = vsel %vm995, 1, 0
    %v997 = vmul.u32 %v996, 5
    %v998 = vsub.s32 %v992, %v997
    %vm999 = vcmp.ge.s32.totalorder %v998, 0
    %vm1000 = vcmp.lt.s32.totalorder %v998, 5
    %vm1001 = vmand %vm999, %vm1000
    %v1002 = vsub.s32 %v521, 3
    %vm1003 = vcmp.ge.s32.totalorder %v998, %v1002
    %v1004 = vadd.s32 %v521, 3
    %vm1005 = vcmp.le.s32.totalorder %v998, %v1004
    %vm1006 = vmand %vm1003, %vm1005
    %vm1007 = vmand %vm1001, %vm1006
    %v1008 = vsel %vm1007, %v988, -1e+30
    %vm1009 = vcmask 78848
    %v1010 = vsel %vm1009, %v1008, -inf
    %1011 = vmax.xlane.f32.xlu0 %v1010
    %v1012 = vpop.xlane.xlu0 %1011
    %v1013 = vsub.f32 %v1008, %v1012
    %v1014 = vmul.f32 %v1013, 1.442695
    %v1015 = vpow.pop %v1014
    %v1016 = vsel %vm1007, %v1015, 0.0
    %v1017 = vsel %vm1009, %v1016, 0.0
    %1018 = vadd.xlane.f32.xlu0 %v1017
    %v1019 = vpop.xlane.xlu0 %1018
    %v1020 = vrcp.pop %v1019
    %v1021 = vmul.f32 %v1016, %v1020
    %v1022 = vcvt.s32.f32 %v998
    %v1023 = vsub.f32 %v1022, %v520
    %v1024 = vrcp.pop 3.0
    %v1025 = vmul.f32 %v1023, %v1024
    %v1026 = vmul.f32 %v1025, %v1025
    %v1027 = vmul.f32 %v1026, -2.0
    %v1028 = vmul.f32 %v1027, 1.442695
    %v1029 = vpow.pop %v1028
    %v1030 = vmul.f32 %v1021, %v1029
    %v1031 = vld [vmem:[%s2] sm:$0xff]
    %v1032 = vld [vmem:[%s2 + $0x8] sm:$0x3]
    %vm1033 = vcmask 80896
    %v1035 = vsel %vm1033, %v1030, 0
    %vm1037 = vcmask 1041408
    %v1039 = vsel %vm1037, %v1032, 0
    %1041 = vmatprep.subr.mxu0 0.0
    %v1042 = vand.u32 %v1031, 4294901760
    %1043 = vmatpush1.msra.mxu0 %v1042
    %1044 = vmatprep.subr.mxu0 0.0
    %v1045 = vand.u32 %v1039, 4294901760
    %1046 = vmatpush1.msra.mxu0 %v1045
    %1047 = vmatprep.subr.mxu0 0.0
    %1048 = vmatpush1.msra.mxu0 0.0
    %1049 = vmatprep.subr.mxu0 0.0
    %1050 = vmatpush1.msra.mxu0 0.0
    %1051 = vmatprep.subr.mxu0 0.0
    %1052 = vmatpush1.msra.mxu0 0.0
    %1053 = vmatprep.subr.mxu0 0.0
    %1054 = vmatpush1.msra.mxu0 0.0
    %1055 = vmatprep.subr.mxu0 0.0
    %1056 = vmatpush1.msra.mxu0 0.0
    %1057 = vmatprep.subr.mxu0 0.0
    %1058 = vmatpush1.msra.mxu0 0.0
    %1059 = vmatprep.subr.mxu0 0.0
    %1060 = vmatpush1.msra.mxu0 0.0
    %1061 = vmatprep.subr.mxu0 0.0
    %1062 = vmatpush1.msra.mxu0 0.0
    %1063 = vmatprep.subr.mxu0 0.0
    %1064 = vmatpush1.msra.mxu0 0.0
    %1065 = vmatprep.subr.mxu0 0.0
    %1066 = vmatpush1.msra.mxu0 0.0
    %1067 = vmatprep.subr.mxu0 0.0
    %1068 = vmatpush1.msra.mxu0 0.0
    %1069 = vmatprep.subr.mxu0 0.0
    %1070 = vmatpush1.msra.mxu0 0.0
    %1071 = vmatprep.subr.mxu0 0.0
    %1072 = vmatpush1.msra.mxu0 0.0
    %1073 = vmatprep.subr.mxu0 0.0
    %1074 = vmatpush1.msra.mxu0 0.0
    %1075 = vmatprep.subr.mxu0 0.0
    %1076 = vmatpush1.msra.mxu0 0.0
    %1077 = vmatprep.subr.mxu0 0.0
    %1078 = vmatpush1.msra.mxu0 0.0
    %1079 = vmatprep.subr.mxu0 0.0
    %1080 = vmatpush1.msra.mxu0 0.0
    %1081 = vmatprep.subr.mxu0 0.0
    %1082 = vmatpush1.msra.mxu0 0.0
    %1083 = vmatprep.subr.mxu0 0.0
    %1084 = vmatpush1.msra.mxu0 0.0
    %1085 = vmatprep.subr.mxu0 0.0
    %1086 = vmatpush1.msra.mxu0 0.0
    %1087 = vmatprep.subr.mxu0 0.0
    %1088 = vmatpush1.msra.mxu0 0.0
    %1089 = vmatprep.subr.mxu0 0.0
    %1090 = vmatpush1.msra.mxu0 0.0
    %1091 = vmatprep.subr.mxu0 0.0
    %1092 = vmatpush1.msra.mxu0 0.0
    %1093 = vmatprep.subr.mxu0 0.0
    %1094 = vmatpush1.msra.mxu0 0.0
    %1095 = vmatprep.subr.mxu0 0.0
    %1096 = vmatpush1.msra.mxu0 0.0
    %1097 = vmatprep.subr.mxu0 0.0
    %1098 = vmatpush1.msra.mxu0 0.0
    %1099 = vmatprep.subr.mxu0 0.0
    %1100 = vmatpush1.msra.mxu0 0.0
    %1101 = vmatprep.subr.mxu0 0.0
    %1102 = vmatpush1.msra.mxu0 0.0
    %1103 = vmatprep.subr.mxu0 0.0
    %1104 = vmatpush1.msra.mxu0 0.0
    %1105 = vmatprep.subr.mxu0 0.0
    %1106 = vmatpush1.msra.mxu0 0.0
    %1107 = vmatprep.mubr.f32.mxu0 0.0
    %v1108 = vand.u32 %v1035, 4294901760
    %v1109 = vsub.f32 %v1035, %v1108
    %v1110 = vand.u32 %v1109, 4294901760
    %v1111 = vsub.f32 %v1109, %v1110
    %v1112 = vand.u32 %v1111, 4294901760
    %1113 = vmatmul.mubr.f32.gmra.mrb[0].mxu0 %v1112
    %v1114 = vpop.f32.mrb[0].mxu0
    %v1115 = vadd.f32 0.0, %v1114
    %v1116 = vpop.f32.mrb[0].mxu0
    %1117 = vdwg.mxu0
    %1118 = vmatprep.subr.mxu0 0.0
    %v1119 = vand.u32 %v1031, 4294901760
    %v1120 = vsub.f32 %v1031, %v1119
    %v1121 = vand.u32 %v1120, 4294901760
    %v1122 = vsub.f32 %v1120, %v1121
    %v1123 = vand.u32 %v1122, 4294901760
    %1124 = vmatpush1.msra.mxu0 %v1123
    %1125 = vmatprep.subr.mxu0 0.0
    %v1126 = vand.u32 %v1039, 4294901760
    %v1127 = vsub.f32 %v1039, %v1126
    %v1128 = vand.u32 %v1127, 4294901760
    %v1129 = vsub.f32 %v1127, %v1128
    %v1130 = vand.u32 %v1129, 4294901760
    %1131 = vmatpush1.msra.mxu0 %v1130
    %1132 = vmatprep.subr.mxu0 0.0
    %1133 = vmatpush1.msra.mxu0 0.0
    %1134 = vmatprep.subr.mxu0 0.0
    %1135 = vmatpush1.msra.mxu0 0.0
    %1136 = vmatprep.subr.mxu0 0.0
    %1137 = vmatpush1.msra.mxu0 0.0
    %1138 = vmatprep.subr.mxu0 0.0
    %1139 = vmatpush1.msra.mxu0 0.0
    %1140 = vmatprep.subr.mxu0 0.0
    %1141 = vmatpush1.msra.mxu0 0.0
    %1142 = vmatprep.subr.mxu0 0.0
    %1143 = vmatpush1.msra.mxu0 0.0
    %1144 = vmatprep.subr.mxu0 0.0
    %1145 = vmatpush1.msra.mxu0 0.0
    %1146 = vmatprep.subr.mxu0 0.0
    %1147 = vmatpush1.msra.mxu0 0.0
    %1148 = vmatprep.subr.mxu0 0.0
    %1149 = vmatpush1.msra.mxu0 0.0
    %1150 = vmatprep.subr.mxu0 0.0
    %1151 = vmatpush1.msra.mxu0 0.0
    %1152 = vmatprep.subr.mxu0 0.0
    %1153 = vmatpush1.msra.mxu0 0.0
    %1154 = vmatprep.subr.mxu0 0.0
    %1155 = vmatpush1.msra.mxu0 0.0
    %1156 = vmatprep.subr.mxu0 0.0
    %1157 = vmatpush1.msra.mxu0 0.0
    %1158 = vmatprep.subr.mxu0 0.0
    %1159 = vmatpush1.msra.mxu0 0.0
    %1160 = vmatprep.subr.mxu0 0.0
    %1161 = vmatpush1.msra.mxu0 0.0
    %1162 = vmatprep.subr.mxu0 0.0
    %1163 = vmatpush1.msra.mxu0 0.0
    %1164 = vmatprep.subr.mxu0 0.0
    %1165 = vmatpush1.msra.mxu0 0.0
    %1166 = vmatprep.subr.mxu0 0.0
    %1167 = vmatpush1.msra.mxu0 0.0
    %1168 = vmatprep.subr.mxu0 0.0
    %1169 = vmatpush1.msra.mxu0 0.0
    %1170 = vmatprep.subr.mxu0 0.0
    %1171 = vmatpush1.msra.mxu0 0.0
    %1172 = vmatprep.subr.mxu0 0.0
    %1173 = vmatpush1.msra.mxu0 0.0
    %1174 = vmatprep.subr.mxu0 0.0
    %1175 = vmatpush1.msra.mxu0 0.0
    %1176 = vmatprep.subr.mxu0 0.0
    %1177 = vmatpush1.msra.mxu0 0.0
    %1178 = vmatprep.subr.mxu0 0.0
    %1179 = vmatpush1.msra.mxu0 0.0
    %1180 = vmatprep.subr.mxu0 0.0
    %1181 = vmatpush1.msra.mxu0 0.0
    %1182 = vmatprep.subr.mxu0 0.0
    %1183 = vmatpush1.msra.mxu0 0.0
    %1184 = vmatprep.subr.mxu0 0.0
    %1185 = vmatpush1.msra.mxu0 0.0
    %1186 = vmatprep.subr.mxu0 0.0
    %1187 = vmatpush1.msra.mxu0 0.0
    %1188 = vmatprep.subr.mxu0 0.0
    %1189 = vmatpush1.msra.mxu0 0.0
    %1190 = vmatprep.subr.mxu0 0.0
    %1191 = vmatpush1.msra.mxu0 0.0
    %1192 = vmatprep.mubr.f32.mxu0 0.0
    %v1193 = vand.u32 %v1035, 4294901760
    %1194 = vmatmul.mubr.f32.gmra.mrb[0].mxu0 %v1193
    %v1195 = vpop.f32.mrb[0].mxu0
    %v1196 = vadd.f32 %v1115, %v1195
    %v1197 = vpop.f32.mrb[0].mxu0
    %1198 = vdwg.mxu0
    %1199 = vmatprep.subr.mxu0 0.0
    %v1200 = vand.u32 %v1031, 4294901760
    %v1201 = vsub.f32 %v1031, %v1200
    %1202 = vmatpush1.msra.mxu0 %v1201
    %1203 = vmatprep.subr.mxu0 0.0
    %v1204 = vand.u32 %v1039, 4294901760
    %v1205 = vsub.f32 %v1039, %v1204
    %1206 = vmatpush1.msra.mxu0 %v1205
    %1207 = vmatprep.subr.mxu0 0.0
    %1208 = vmatpush1.msra.mxu0 0.0
    %1209 = vmatprep.subr.mxu0 0.0
    %1210 = vmatpush1.msra.mxu0 0.0
    %1211 = vmatprep.subr.mxu0 0.0
    %1212 = vmatpush1.msra.mxu0 0.0
    %1213 = vmatprep.subr.mxu0 0.0
    %1214 = vmatpush1.msra.mxu0 0.0
    %1215 = vmatprep.subr.mxu0 0.0
    %1216 = vmatpush1.msra.mxu0 0.0
    %1217 = vmatprep.subr.mxu0 0.0
    %1218 = vmatpush1.msra.mxu0 0.0
    %1219 = vmatprep.subr.mxu0 0.0
    %1220 = vmatpush1.msra.mxu0 0.0
    %1221 = vmatprep.subr.mxu0 0.0
    %1222 = vmatpush1.msra.mxu0 0.0
    %1223 = vmatprep.subr.mxu0 0.0
    %1224 = vmatpush1.msra.mxu0 0.0
    %1225 = vmatprep.subr.mxu0 0.0
    %1226 = vmatpush1.msra.mxu0 0.0
    %1227 = vmatprep.subr.mxu0 0.0
    %1228 = vmatpush1.msra.mxu0 0.0
    %1229 = vmatprep.subr.mxu0 0.0
    %1230 = vmatpush1.msra.mxu0 0.0
    %1231 = vmatprep.subr.mxu0 0.0
    %1232 = vmatpush1.msra.mxu0 0.0
    %1233 = vmatprep.subr.mxu0 0.0
    %1234 = vmatpush1.msra.mxu0 0.0
    %1235 = vmatprep.subr.mxu0 0.0
    %1236 = vmatpush1.msra.mxu0 0.0
    %1237 = vmatprep.subr.mxu0 0.0
    %1238 = vmatpush1.msra.mxu0 0.0
    %1239 = vmatprep.subr.mxu0 0.0
    %1240 = vmatpush1.msra.mxu0 0.0
    %1241 = vmatprep.subr.mxu0 0.0
    %1242 = vmatpush1.msra.mxu0 0.0
    %1243 = vmatprep.subr.mxu0 0.0
    %1244 = vmatpush1.msra.mxu0 0.0
    %1245 = vmatprep.subr.mxu0 0.0
    %1246 = vmatpush1.msra.mxu0 0.0
    %1247 = vmatprep.subr.mxu0 0.0
    %1248 = vmatpush1.msra.mxu0 0.0
    %1249 = vmatprep.subr.mxu0 0.0
    %1250 = vmatpush1.msra.mxu0 0.0
    %1251 = vmatprep.subr.mxu0 0.0
    %1252 = vmatpush1.msra.mxu0 0.0
    %1253 = vmatprep.subr.mxu0 0.0
    %1254 = vmatpush1.msra.mxu0 0.0
    %1255 = vmatprep.subr.mxu0 0.0
    %1256 = vmatpush1.msra.mxu0 0.0
    %1257 = vmatprep.subr.mxu0 0.0
    %1258 = vmatpush1.msra.mxu0 0.0
    %1259 = vmatprep.subr.mxu0 0.0
    %1260 = vmatpush1.msra.mxu0 0.0
    %1261 = vmatprep.subr.mxu0 0.0
    %1262 = vmatpush1.msra.mxu0 0.0
    %1263 = vmatprep.subr.mxu0 0.0
    %1264 = vmatpush1.msra.mxu0 0.0
    %1265 = vmatprep.subr.mxu0 0.0
    %1266 = vmatpush1.msra.mxu0 0.0
    %1267 = vmatprep.mubr.f32.mxu0 0.0
    %v1268 = vand.u32 %v1035, 4294901760
    %v1269 = vsub.f32 %v1035, %v1268
    %1270 = vmatmul.mubr.f32.gmra.mrb[0].mxu0 %v1269
    %v1271 = vpop.f32.mrb[0].mxu0
    %v1272 = vadd.f32 %v1196, %v1271
    %v1273 = vpop.f32.mrb[0].mxu0
    %1274 = vdwg.mxu0
    %1275 = vmatprep.subr.mxu0 0.0
    %v1276 = vand.u32 %v1031, 4294901760
    %1277 = vmatpush1.msra.mxu0 %v1276
    %1278 = vmatprep.subr.mxu0 0.0
    %v1279 = vand.u32 %v1039, 4294901760
    %1280 = vmatpush1.msra.mxu0 %v1279
    %1281 = vmatprep.subr.mxu0 0.0
    %1282 = vmatpush1.msra.mxu0 0.0
    %1283 = vmatprep.subr.mxu0 0.0
    %1284 = vmatpush1.msra.mxu0 0.0
    %1285 = vmatprep.subr.mxu0 0.0
    %1286 = vmatpush1.msra.mxu0 0.0
    %1287 = vmatprep.subr.mxu0 0.0
    %1288 = vmatpush1.msra.mxu0 0.0
    %1289 = vmatprep.subr.mxu0 0.0
    %1290 = vmatpush1.msra.mxu0 0.0
    %1291 = vmatprep.subr.mxu0 0.0
    %1292 = vmatpush1.msra.mxu0 0.0
    %1293 = vmatprep.subr.mxu0 0.0
    %1294 = vmatpush1.msra.mxu0 0.0
    %1295 = vmatprep.subr.mxu0 0.0
    %1296 = vmatpush1.msra.mxu0 0.0
    %1297 = vmatprep.subr.mxu0 0.0
    %1298 = vmatpush1.msra.mxu0 0.0
    %1299 = vmatprep.subr.mxu0 0.0
    %1300 = vmatpush1.msra.mxu0 0.0
    %1301 = vmatprep.subr.mxu0 0.0
    %1302 = vmatpush1.msra.mxu0 0.0
    %1303 = vmatprep.subr.mxu0 0.0
    %1304 = vmatpush1.msra.mxu0 0.0
    %1305 = vmatprep.subr.mxu0 0.0
    %1306 = vmatpush1.msra.mxu0 0.0
    %1307 = vmatprep.subr.mxu0 0.0
    %1308 = vmatpush1.msra.mxu0 0.0
    %1309 = vmatprep.subr.mxu0 0.0
    %1310 = vmatpush1.msra.mxu0 0.0
    %1311 = vmatprep.subr.mxu0 0.0
    %1312 = vmatpush1.msra.mxu0 0.0
    %1313 = vmatprep.subr.mxu0 0.0
    %1314 = vmatpush1.msra.mxu0 0.0
    %1315 = vmatprep.subr.mxu0 0.0
    %1316 = vmatpush1.msra.mxu0 0.0
    %1317 = vmatprep.subr.mxu0 0.0
    %1318 = vmatpush1.msra.mxu0 0.0
    %1319 = vmatprep.subr.mxu0 0.0
    %1320 = vmatpush1.msra.mxu0 0.0
    %1321 = vmatprep.subr.mxu0 0.0
    %1322 = vmatpush1.msra.mxu0 0.0
    %1323 = vmatprep.subr.mxu0 0.0
    %1324 = vmatpush1.msra.mxu0 0.0
    %1325 = vmatprep.subr.mxu0 0.0
    %1326 = vmatpush1.msra.mxu0 0.0
    %1327 = vmatprep.subr.mxu0 0.0
    %1328 = vmatpush1.msra.mxu0 0.0
    %1329 = vmatprep.subr.mxu0 0.0
    %1330 = vmatpush1.msra.mxu0 0.0
    %1331 = vmatprep.subr.mxu0 0.0
    %1332 = vmatpush1.msra.mxu0 0.0
    %1333 = vmatprep.subr.mxu0 0.0
    %1334 = vmatpush1.msra.mxu0 0.0
    %1335 = vmatprep.subr.mxu0 0.0
    %1336 = vmatpush1.msra.mxu0 0.0
    %1337 = vmatprep.subr.mxu0 0.0
    %1338 = vmatpush1.msra.mxu0 0.0
    %1339 = vmatprep.subr.mxu0 0.0
    %1340 = vmatpush1.msra.mxu0 0.0
    %1341 = vmatprep.mubr.f32.mxu0 0.0
    %v1342 = vand.u32 %v1035, 4294901760
    %v1343 = vsub.f32 %v1035, %v1342
    %v1344 = vand.u32 %v1343, 4294901760
    %1345 = vmatmul.mubr.f32.gmra.mrb[0].mxu0 %v1344
    %v1346 = vpop.f32.mrb[0].mxu0
    %v1347 = vadd.f32 %v1272, %v1346
    %v1348 = vpop.f32.mrb[0].mxu0
    %1349 = vdwg.mxu0
    %1350 = vmatprep.subr.mxu0 0.0
    %v1351 = vand.u32 %v1031, 4294901760
    %v1352 = vsub.f32 %v1031, %v1351
    %v1353 = vand.u32 %v1352, 4294901760
    %1354 = vmatpush1.msra.mxu0 %v1353
    %1355 = vmatprep.subr.mxu0 0.0
    %v1356 = vand.u32 %v1039, 4294901760
    %v1357 = vsub.f32 %v1039, %v1356
    %v1358 = vand.u32 %v1357, 4294901760
    %1359 = vmatpush1.msra.mxu0 %v1358
    %1360 = vmatprep.subr.mxu0 0.0
    %1361 = vmatpush1.msra.mxu0 0.0
    %1362 = vmatprep.subr.mxu0 0.0
    %1363 = vmatpush1.msra.mxu0 0.0
    %1364 = vmatprep.subr.mxu0 0.0
    %1365 = vmatpush1.msra.mxu0 0.0
    %1366 = vmatprep.subr.mxu0 0.0
    %1367 = vmatpush1.msra.mxu0 0.0
    %1368 = vmatprep.subr.mxu0 0.0
    %1369 = vmatpush1.msra.mxu0 0.0
    %1370 = vmatprep.subr.mxu0 0.0
    %1371 = vmatpush1.msra.mxu0 0.0
    %1372 = vmatprep.subr.mxu0 0.0
    %1373 = vmatpush1.msra.mxu0 0.0
    %1374 = vmatprep.subr.mxu0 0.0
    %1375 = vmatpush1.msra.mxu0 0.0
    %1376 = vmatprep.subr.mxu0 0.0
    %1377 = vmatpush1.msra.mxu0 0.0
    %1378 = vmatprep.subr.mxu0 0.0
    %1379 = vmatpush1.msra.mxu0 0.0
    %1380 = vmatprep.subr.mxu0 0.0
    %1381 = vmatpush1.msra.mxu0 0.0
    %1382 = vmatprep.subr.mxu0 0.0
    %1383 = vmatpush1.msra.mxu0 0.0
    %1384 = vmatprep.subr.mxu0 0.0
    %1385 = vmatpush1.msra.mxu0 0.0
    %1386 = vmatprep.subr.mxu0 0.0
    %1387 = vmatpush1.msra.mxu0 0.0
    %1388 = vmatprep.subr.mxu0 0.0
    %1389 = vmatpush1.msra.mxu0 0.0
    %1390 = vmatprep.subr.mxu0 0.0
    %1391 = vmatpush1.msra.mxu0 0.0
    %1392 = vmatprep.subr.mxu0 0.0
    %1393 = vmatpush1.msra.mxu0 0.0
    %1394 = vmatprep.subr.mxu0 0.0
    %1395 = vmatpush1.msra.mxu0 0.0
    %1396 = vmatprep.subr.mxu0 0.0
    %1397 = vmatpush1.msra.mxu0 0.0
    %1398 = vmatprep.subr.mxu0 0.0
    %1399 = vmatpush1.msra.mxu0 0.0
    %1400 = vmatprep.subr.mxu0 0.0
    %1401 = vmatpush1.msra.mxu0 0.0
    %1402 = vmatprep.subr.mxu0 0.0
    %1403 = vmatpush1.msra.mxu0 0.0
    %1404 = vmatprep.subr.mxu0 0.0
    %1405 = vmatpush1.msra.mxu0 0.0
    %1406 = vmatprep.subr.mxu0 0.0
    %1407 = vmatpush1.msra.mxu0 0.0
    %1408 = vmatprep.subr.mxu0 0.0
    %1409 = vmatpush1.msra.mxu0 0.0
    %1410 = vmatprep.subr.mxu0 0.0
    %1411 = vmatpush1.msra.mxu0 0.0
    %1412 = vmatprep.subr.mxu0 0.0
    %1413 = vmatpush1.msra.mxu0 0.0
    %1414 = vmatprep.subr.mxu0 0.0
    %1415 = vmatpush1.msra.mxu0 0.0
    %1416 = vmatprep.subr.mxu0 0.0
    %1417 = vmatpush1.msra.mxu0 0.0
    %1418 = vmatprep.subr.mxu0 0.0
    %1419 = vmatpush1.msra.mxu0 0.0
    %1420 = vmatprep.mubr.f32.mxu0 0.0
    %v1421 = vand.u32 %v1035, 4294901760
    %1422 = vmatmul.mubr.f32.gmra.mrb[0].mxu0 %v1421
    %v1423 = vpop.f32.mrb[0].mxu0
    %v1424 = vadd.f32 %v1347, %v1423
    %v1425 = vpop.f32.mrb[0].mxu0
    %1426 = vdwg.mxu0
    %1427 = vmatprep.subr.mxu0 0.0
    %v1428 = vand.u32 %v1031, 4294901760
    %1429 = vmatpush1.msra.mxu0 %v1428
    %1430 = vmatprep.subr.mxu0 0.0
    %v1431 = vand.u32 %v1039, 4294901760
    %1432 = vmatpush1.msra.mxu0 %v1431
    %1433 = vmatprep.subr.mxu0 0.0
    %1434 = vmatpush1.msra.mxu0 0.0
    %1435 = vmatprep.subr.mxu0 0.0
    %1436 = vmatpush1.msra.mxu0 0.0
    %1437 = vmatprep.subr.mxu0 0.0
    %1438 = vmatpush1.msra.mxu0 0.0
    %1439 = vmatprep.subr.mxu0 0.0
    %1440 = vmatpush1.msra.mxu0 0.0
    %1441 = vmatprep.subr.mxu0 0.0
    %1442 = vmatpush1.msra.mxu0 0.0
    %1443 = vmatprep.subr.mxu0 0.0
    %1444 = vmatpush1.msra.mxu0 0.0
    %1445 = vmatprep.subr.mxu0 0.0
    %1446 = vmatpush1.msra.mxu0 0.0
    %1447 = vmatprep.subr.mxu0 0.0
    %1448 = vmatpush1.msra.mxu0 0.0
    %1449 = vmatprep.subr.mxu0 0.0
    %1450 = vmatpush1.msra.mxu0 0.0
    %1451 = vmatprep.subr.mxu0 0.0
    %1452 = vmatpush1.msra.mxu0 0.0
    %1453 = vmatprep.subr.mxu0 0.0
    %1454 = vmatpush1.msra.mxu0 0.0
    %1455 = vmatprep.subr.mxu0 0.0
    %1456 = vmatpush1.msra.mxu0 0.0
    %1457 = vmatprep.subr.mxu0 0.0
    %1458 = vmatpush1.msra.mxu0 0.0
    %1459 = vmatprep.subr.mxu0 0.0
    %1460 = vmatpush1.msra.mxu0 0.0
    %1461 = vmatprep.subr.mxu0 0.0
    %1462 = vmatpush1.msra.mxu0 0.0
    %1463 = vmatprep.subr.mxu0 0.0
    %1464 = vmatpush1.msra.mxu0 0.0
    %1465 = vmatprep.subr.mxu0 0.0
    %1466 = vmatpush1.msra.mxu0 0.0
    %1467 = vmatprep.subr.mxu0 0.0
    %1468 = vmatpush1.msra.mxu0 0.0
    %1469 = vmatprep.subr.mxu0 0.0
    %1470 = vmatpush1.msra.mxu0 0.0
    %1471 = vmatprep.subr.mxu0 0.0
    %1472 = vmatpush1.msra.mxu0 0.0
    %1473 = vmatprep.subr.mxu0 0.0
    %1474 = vmatpush1.msra.mxu0 0.0
    %1475 = vmatprep.subr.mxu0 0.0
    %1476 = vmatpush1.msra.mxu0 0.0
    %1477 = vmatprep.subr.mxu0 0.0
    %1478 = vmatpush1.msra.mxu0 0.0
    %1479 = vmatprep.subr.mxu0 0.0
    %1480 = vmatpush1.msra.mxu0 0.0
    %1481 = vmatprep.subr.mxu0 0.0
    %1482 = vmatpush1.msra.mxu0 0.0
    %1483 = vmatprep.subr.mxu0 0.0
    %1484 = vmatpush1.msra.mxu0 0.0
    %1485 = vmatprep.subr.mxu0 0.0
    %1486 = vmatpush1.msra.mxu0 0.0
    %1487 = vmatprep.subr.mxu0 0.0
    %1488 = vmatpush1.msra.mxu0 0.0
    %1489 = vmatprep.subr.mxu0 0.0
    %1490 = vmatpush1.msra.mxu0 0.0
    %1491 = vmatprep.subr.mxu0 0.0
    %1492 = vmatpush1.msra.mxu0 0.0
    %1493 = vmatprep.mubr.f32.mxu0 0.0
    %v1494 = vand.u32 %v1035, 4294901760
    %1495 = vmatmul.mubr.f32.gmra.mrb[0].mxu0 %v1494
    %v1496 = vpop.f32.mrb[0].mxu0
    %v1497 = vadd.f32 %v1424, %v1496
    %v1498 = vpop.f32.mrb[0].mxu0
    %1499 = vdwg.mxu0
    %vm1500 = vcmask 70656
    %1501 = vst.msk [vmem:[#allocation7] sm:$0x3f] %vm1500, %v1497
    // Predicated region
    $region26: #{tpu_custom_call.1} parent=1 // pred_check
      _
    $region27: #{tpu_custom_call.1} parent=1 // pred_check_branch
      %1503 = sbr.rel (0) target = $region29
    $region28: #{tpu_custom_call.1} parent=1 // pred_region
      %s1505 = ssub.s32 128, 128
      %1506 = vsyncadd [#allocation4], %s1505
      %s1508 = sshll.u32 [#allocation7], 4
      %s1509 = int_to_ptr.vmem [resolvable:$true] %s1508
      %1511 = dma.vmem_to_hbm [thread:$0]  %s1509, 128, %s4, [#allocation4]
    $region29: #{tpu_custom_call.1} parent=1 // pred_fallthru
      _
    // Predicated region
    $region30: #{tpu_custom_call.1} parent=1 // pred_check
      _
    $region31: #{tpu_custom_call.1} parent=1 // pred_check_branch
      %1513 = sbr.rel (0) target = $region33
    $region32: #{tpu_custom_call.1} parent=1 // pred_region
      %1514 = dma.done [#allocation4], 128
    $region33: #{tpu_custom_call.1} parent=1 // pred_fallthru
      _
    %1515 = vsyncpa [#allocation3], 1
    %1516 = vsyncpa [#allocation6], 1
    %1517 = vsyncpa [#allocation4], 1

</llo_original>
